<compile_context>
chip_gen: v5e
topology: v5e:2x2
jax: 0.10.0
libtpu: 0.0.40
codegen_flags: <defaults>
</compile_context>

<pallas_src>
import functools

import jax
import jax.numpy as jnp
from jax.experimental import pallas as pl
from jax.experimental.pallas import tpu as pltpu

# Tunables (multiples of 128; TILE_COLS must be a multiple of CHUNK).
TILE_COLS = 32768   # lane extent of each DMA block
CHUNK = 512         # lane extent of each in-register compute slice
UNROLL = 4          # partial unroll of the chunk loop


def _round_up(x, m):
    return ((x + m - 1) // m) * m


def _ce_accumulate(pred_ref, tgt_ref, sum_ref, cnt_ref, *,
                   n_cols, col_base, width, chunk, use_mask, unroll):
    """Accumulate cross-entropy partial sums for one (classes, width) tile.

    pred_ref : (d, width) VMEM block (classes on sublanes, rows on lanes).
    tgt_ref  : (1, width) int32 VMEM block (argmax class per row, -1 = invalid row).
    sum_ref / cnt_ref : (1, chunk) f32 persistent accumulators.
    n_cols   : total number of real rows in this segment (static Python int).
    col_base : first global column covered by this block (traced scalar).
    """
    d = pred_ref.shape[0]
    n_chunks = width // chunk                    # static trip count
    unroll_eff = max(1, min(unroll, n_chunks))

    # Iotas hoisted out of the loop body (JAX does not CSE broadcast_in_dim).
    lane_iota = jax.lax.broadcasted_iota(jnp.int32, (1, chunk), 1)
    sub_iota = jax.lax.broadcasted_iota(jnp.int32, (d, chunk), 0)

    def body(c, carry):
        acc_sum, acc_cnt = carry
        off = pl.multiple_of(c * chunk, chunk)
        pred = pred_ref[:, pl.ds(off, chunk)].astype(jnp.float32)   # (d, chunk)
        tgt = tgt_ref[:, pl.ds(off, chunk)]                         # (1, chunk) int32

        col = (col_base + off) + lane_iota                          # (1, chunk)
        in_bounds = col < n_cols
        if use_mask:
            valid = jnp.logical_and(in_bounds, tgt >= 0)
        else:
            valid = in_bounds

        # logsumexp over classes (sublane reductions -> XLU)
        pmax = jnp.max(pred, axis=0, keepdims=True)
        lse = pmax + jnp.log(jnp.sum(jnp.exp(pred - pmax), axis=0, keepdims=True))
        # logit at the target class (invalid rows have tgt == -1 -> 0, masked anyway)
        pred_t = jnp.sum(jnp.where(sub_iota == tgt, pred, 0.0), axis=0, keepdims=True)

        ce = lse - pred_t                                           # (1, chunk)
        # where() is a select, so NaN/Inf garbage from out-of-bounds lanes cannot leak.
        return (acc_sum + jnp.where(valid, ce, 0.0),
                acc_cnt + valid.astype(jnp.float32))

    zeros = jnp.zeros((1, chunk), jnp.float32)
    acc_sum, acc_cnt = jax.lax.fori_loop(0, n_chunks, body, (zeros, zeros),
                                         unroll=unroll_eff)
    # single VMEM read-modify-write per grid step
    sum_ref[...] += acc_sum
    cnt_ref[...] += acc_cnt


def _fused_loss_kernel(px_ref, txg_ref, pe_ref, teg_ref, py_ref, tyg_ref,
                       out_ref,
                       sum_x, cnt_x, sum_e, cnt_e, sum_y, cnt_y,
                       *, chunk, widths, counts, grids, lam_e, lam_y, unroll):
    w_x, w_e, w_y = widths
    n_x, n_e, n_y = counts
    g_x, g_e, g_y = grids
    n_steps = g_x + g_e + g_y

    i = pl.program_id(0)

    @pl.when(i == 0)
    def _():
        for ref in (sum_x, cnt_x, sum_e, cnt_e, sum_y, cnt_y):
            ref[...] = jnp.zeros_like(ref)

    @pl.when(i < g_x)
    def _():
        _ce_accumulate(px_ref, txg_ref, sum_x, cnt_x,
                       n_cols=n_x, col_base=i * w_x, width=w_x, chunk=chunk,
                       use_mask=True, unroll=unroll)

    @pl.when(jnp.logical_and(i >= g_x, i < g_x + g_e))
    def _():
        _ce_accumulate(pe_ref, teg_ref, sum_e, cnt_e,
                       n_cols=n_e, col_base=(i - g_x) * w_e, width=w_e, chunk=chunk,
                       use_mask=True, unroll=unroll)

    @pl.when(i >= g_x + g_e)
    def _():
        # the reference applies no validity mask to the y loss
        _ce_accumulate(py_ref, tyg_ref, sum_y, cnt_y,
                       n_cols=n_y, col_base=(i - g_x - g_e) * w_y, width=w_y, chunk=chunk,
                       use_mask=False, unroll=unroll)

    @pl.when(i == n_steps - 1)
    def _():
        sx = jnp.sum(sum_x[...], axis=1, keepdims=True)
        se = jnp.sum(sum_e[...], axis=1, keepdims=True)
        sy = jnp.sum(sum_y[...], axis=1, keepdims=True)
        # guard: a segment with zero valid rows yields 0 instead of NaN (reference would NaN)
        nx = jnp.maximum(jnp.sum(cnt_x[...], axis=1, keepdims=True), 1.0)
        ne = jnp.maximum(jnp.sum(cnt_e[...], axis=1, keepdims=True), 1.0)
        ny = jnp.maximum(jnp.sum(cnt_y[...], axis=1, keepdims=True), 1.0)
        out_ref[...] = sx / nx + lam_e * (se / ne) + lam_y * (sy / ny)


@functools.partial(jax.jit,
                   static_argnames=("lambda_e", "lambda_y", "tile_cols", "chunk", "unroll"))
def train_loss_discrete(masked_pred_X, masked_pred_E, pred_y,
                        true_X, true_E, true_y,
                        lambda_e=5.0, lambda_y=0.0,
                        tile_cols=TILE_COLS, chunk=CHUNK, unroll=UNROLL):
    """Pallas version of TrainLossDiscrete.forward (log=False, no valence/hybridization)."""
    assert chunk % 128 == 0 and tile_cols % chunk == 0

    dx = masked_pred_X.shape[-1]
    de = masked_pred_E.shape[-1]
    dy = pred_y.shape[-1]

    # Lane-dense transposed pred slabs: (classes, rows).
    # TODO(synk): each .T is a full HBM read+write pre-pass; emitting (classes, rows) logits
    # (or narrower dtypes) upstream would remove it.  bf16 preds are supported as-is (cast
    # to f32 in-register inside the kernel).
    pX = jnp.reshape(masked_pred_X, (-1, dx)).T
    pE = jnp.reshape(masked_pred_E, (-1, de)).T
    pY = jnp.reshape(pred_y, (-1, dy)).T

    # Collapse one-hot "true" slabs to int32 argmax targets (-1 = invalid/masked row).
    # These are already lane-dense (1, rows) vectors -> no transpose, ~d x less HBM traffic.
    def _targets(true, use_mask):
        t2 = jnp.reshape(true, (-1, true.shape[-1]))
        tgt = jnp.argmax(t2, axis=-1).astype(jnp.int32)
        if use_mask:
            valid = jnp.any(t2 != 0, axis=-1)
            tgt = jnp.where(valid, tgt, jnp.int32(-1))
        return tgt[None, :]

    tXg = _targets(true_X, True)
    tEg = _targets(true_E, True)
    tYg = _targets(true_y, False)

    n_x, n_e, n_y = pX.shape[1], pE.shape[1], pY.shape[1]

    def _tile(n):
        w = min(tile_cols, _round_up(max(n, 1), chunk))
        g = -(-max(n, 1) // w)   # cdiv
        return w, g

    w_x, g_x = _tile(n_x)
    w_e, g_e = _tile(n_e)
    w_y, g_y = _tile(n_y)

    grid = (g_x + g_e + g_y,)

    def _imap(offset, g):
        # clamp so inactive arrays keep the same block index -> no re-DMA outside their segment
        return lambda i: (0, jnp.maximum(jnp.minimum(i - offset, g - 1), 0))

    kernel = functools.partial(
        _fused_loss_kernel,
        chunk=chunk,
        widths=(w_x, w_e, w_y),
        counts=(n_x, n_e, n_y),
        grids=(g_x, g_e, g_y),
        lam_e=float(lambda_e),
        lam_y=float(lambda_y),
        unroll=unroll,
    )

    out = pl.pallas_call(
        kernel,
        out_shape=jax.ShapeDtypeStruct((1, 1), jnp.float32),
        grid_spec=pltpu.PrefetchScalarGridSpec(
            num_scalar_prefetch=0,
            grid=grid,
            in_specs=[
                pl.BlockSpec((dx, w_x), _imap(0, g_x)),
                pl.BlockSpec((1, w_x), _imap(0, g_x)),
                pl.BlockSpec((de, w_e), _imap(g_x, g_e)),
                pl.BlockSpec((1, w_e), _imap(g_x, g_e)),
                pl.BlockSpec((dy, w_y), _imap(g_x + g_e, g_y)),
                pl.BlockSpec((1, w_y), _imap(g_x + g_e, g_y)),
            ],
            out_specs=pl.BlockSpec((1, 1), lambda i: (0, 0)),
            scratch_shapes=[pltpu.VMEM((1, chunk), jnp.float32) for _ in range(6)],
        ),
        compiler_params=pltpu.CompilerParams(
            dimension_semantics=("arbitrary",),
            vmem_limit_bytes=32 * 1024 * 1024,
        ),
    )(pX, tXg, pE, tEg, pY, tYg)

    # TODO(synk): include_valence_loss / include_hybridization_loss (data-dependent Python dict
    # lookups + .item() loops) and the wandb/log=True path are not translated (defaults off).
    return out[0, 0]


def _reference_loss(masked_pred_X, masked_pred_E, pred_y, true_X, true_E, true_y,
                    lambda_e, lambda_y):
    def ce(pred, true, use_mask=True):
        pred = pred.astype(jnp.float32)
        true = true.astype(jnp.float32)
        mask = jnp.any(true != 0.0, axis=-1) if use_mask else jnp.ones(pred.shape[0], bool)
        tgt = jnp.argmax(true, axis=-1)
        lse = jax.nn.logsumexp(pred, axis=-1)
        pt = jnp.take_along_axis(pred, tgt[:, None], axis=-1)[:, 0]
        row_ce = lse - pt
        return jnp.sum(jnp.where(mask, row_ce, 0.0)) / jnp.sum(mask)

    dx, de = true_X.shape[-1], true_E.shape[-1]
    lX = ce(masked_pred_X.reshape(-1, dx), true_X.reshape(-1, dx))
    lE = ce(masked_pred_E.reshape(-1, de), true_E.reshape(-1, de))
    ly = ce(pred_y, true_y, use_mask=False)
    return lX + lambda_e * lE + lambda_y * ly


if __name__ == "__main__":
    key = jax.random.PRNGKey(0)
    bs, n, dx, de, dy = 2, 24, 5, 5, 3
    lambda_e, lambda_y = 5.0, 1.0

    k1, k2, k3, k4, k5, k6, k7 = jax.random.split(key, 7)

    # predictions: random logits
    masked_pred_X = jax.random.normal(k1, (bs, n, dx), dtype=jnp.float32)
    masked_pred_E = jax.random.normal(k2, (bs, n, n, de), dtype=jnp.float32)
    pred_y = jax.random.normal(k3, (bs, dy), dtype=jnp.float32)

    # ground truth: one-hot, with some rows zeroed (masked-out nodes/edges)
    tX_idx = jax.random.randint(k4, (bs, n), 0, dx)
    true_X = jax.nn.one_hot(tX_idx, dx, dtype=jnp.float32)
    node_valid = (jax.random.uniform(k6, (bs, n)) < 0.75).astype(jnp.float32)
    true_X = true_X * node_valid[..., None]

    tE_idx = jax.random.randint(k5, (bs, n, n), 0, de)
    true_E = jax.nn.one_hot(tE_idx, de, dtype=jnp.float32)
    edge_valid = (jax.random.uniform(k7, (bs, n, n)) < 0.6).astype(jnp.float32)
    true_E = true_E * edge_valid[..., None]

    ty_idx = jax.random.randint(jax.random.PRNGKey(42), (bs,), 0, dy)
    true_y = jax.nn.one_hot(ty_idx, dy, dtype=jnp.float32)

    ref = _reference_loss(masked_pred_X, masked_pred_E, pred_y,
                          true_X, true_E, true_y, lambda_e, lambda_y)

    # default (large-tile) configuration
    out = train_loss_discrete(masked_pred_X, masked_pred_E, pred_y,
                              true_X, true_E, true_y,
                              lambda_e=lambda_e, lambda_y=lambda_y)
    out = jax.block_until_ready(out)
    assert jnp.allclose(out, ref, rtol=1e-5, atol=1e-5), (out, ref)

    # small-tile configuration: exercises the multi-tile grid path (several blocks per
    # segment, clamped index maps, partial last block, unroll clamping) on the same inputs.
    out_small = train_loss_discrete(masked_pred_X, masked_pred_E, pred_y,
                                    true_X, true_E, true_y,
                                    lambda_e=lambda_e, lambda_y=lambda_y,
                                    tile_cols=512, chunk=128)
    out_small = jax.block_until_ready(out_small)
    assert jnp.allclose(out_small, ref, rtol=1e-5, atol=1e-5), (out_small, ref)

    print("KERNEL_OK")
</pallas_src>

<mosaic_0001>
module attributes {stable_mosaic.version = 11 : i64} {
  func.func @_fused_loss_kernel(%arg0: i32, %arg1: memref<5x512xf32, #tpu.memory_space<vmem>>, %arg2: memref<1x512xi32, #tpu.memory_space<vmem>>, %arg3: memref<5x1536xf32, #tpu.memory_space<vmem>>, %arg4: memref<1x1536xi32, #tpu.memory_space<vmem>>, %arg5: memref<3x512xf32, #tpu.memory_space<vmem>>, %arg6: memref<1x512xi32, #tpu.memory_space<vmem>>, %arg7: memref<1x1xf32, #tpu.memory_space<vmem>>, %arg8: memref<1x512xf32, #tpu.memory_space<vmem>>, %arg9: memref<1x512xf32, #tpu.memory_space<vmem>>, %arg10: memref<1x512xf32, #tpu.memory_space<vmem>>, %arg11: memref<1x512xf32, #tpu.memory_space<vmem>>, %arg12: memref<1x512xf32, #tpu.memory_space<vmem>>, %arg13: memref<1x512xf32, #tpu.memory_space<vmem>>) attributes {dimension_semantics = [#tpu.dimension_semantics<arbitrary>], iteration_bounds = array<i64: 3>, scalar_prefetch = 0 : i64, scratch_operands = 6 : i64, tpu.core_type = #tpu.core_type<tc>, window_params = [{transform_indices = @transform_0, window_bounds = array<i64: 5, 512>}, {transform_indices = @transform_1, window_bounds = array<i64: 1, 512>}, {transform_indices = @transform_2, window_bounds = array<i64: 5, 1536>}, {transform_indices = @transform_3, window_bounds = array<i64: 1, 1536>}, {transform_indices = @transform_4, window_bounds = array<i64: 3, 512>}, {transform_indices = @transform_5, window_bounds = array<i64: 1, 512>}, {pipeline_mode = #tpu.pipeline_mode<synchronous>, transform_indices = @transform_6, window_bounds = array<i64: 1, 1>}]} {
    %c0_i32 = arith.constant 0 : i32
    %0 = arith.cmpi eq, %arg0, %c0_i32 : i32
    %1 = arith.extui %0 : i1 to i32
    %c0_i32_0 = arith.constant 0 : i32
    %2 = arith.cmpi ne, %1, %c0_i32_0 : i32
    scf.if %2 {
      %cst = arith.constant 0.000000e+00 : f32
      %17 = vector.broadcast %cst : f32 to vector<1x512xf32>
      %c0 = arith.constant 0 : index
      %c0_8 = arith.constant 0 : index
      %18 = vector.load %arg8[%c0, %c0_8] : memref<1x512xf32, #tpu.memory_space<vmem>>, vector<1x512xf32>
      tpu.vector_store %arg8[%c0, %c0_8], %17 {strides = array<i32>} : memref<1x512xf32, #tpu.memory_space<vmem>>, vector<1x512xf32>,
      %cst_9 = arith.constant 0.000000e+00 : f32
      %19 = vector.broadcast %cst_9 : f32 to vector<1x512xf32>
      %c0_10 = arith.constant 0 : index
      %c0_11 = arith.constant 0 : index
      %20 = vector.load %arg9[%c0_10, %c0_11] : memref<1x512xf32, #tpu.memory_space<vmem>>, vector<1x512xf32>
      tpu.vector_store %arg9[%c0_10, %c0_11], %19 {strides = array<i32>} : memref<1x512xf32, #tpu.memory_space<vmem>>, vector<1x512xf32>,
      %cst_12 = arith.constant 0.000000e+00 : f32
      %21 = vector.broadcast %cst_12 : f32 to vector<1x512xf32>
      %c0_13 = arith.constant 0 : index
      %c0_14 = arith.constant 0 : index
      %22 = vector.load %arg10[%c0_13, %c0_14] : memref<1x512xf32, #tpu.memory_space<vmem>>, vector<1x512xf32>
      tpu.vector_store %arg10[%c0_13, %c0_14], %21 {strides = array<i32>} : memref<1x512xf32, #tpu.memory_space<vmem>>, vector<1x512xf32>,
      %cst_15 = arith.constant 0.000000e+00 : f32
      %23 = vector.broadcast %cst_15 : f32 to vector<1x512xf32>
      %c0_16 = arith.constant 0 : index
      %c0_17 = arith.constant 0 : index
      %24 = vector.load %arg11[%c0_16, %c0_17] : memref<1x512xf32, #tpu.memory_space<vmem>>, vector<1x512xf32>
      tpu.vector_store %arg11[%c0_16, %c0_17], %23 {strides = array<i32>} : memref<1x512xf32, #tpu.memory_space<vmem>>, vector<1x512xf32>,
      %cst_18 = arith.constant 0.000000e+00 : f32
      %25 = vector.broadcast %cst_18 : f32 to vector<1x512xf32>
      %c0_19 = arith.constant 0 : index
      %c0_20 = arith.constant 0 : index
      %26 = vector.load %arg12[%c0_19, %c0_20] : memref<1x512xf32, #tpu.memory_space<vmem>>, vector<1x512xf32>
      tpu.vector_store %arg12[%c0_19, %c0_20], %25 {strides = array<i32>} : memref<1x512xf32, #tpu.memory_space<vmem>>, vector<1x512xf32>,
      %cst_21 = arith.constant 0.000000e+00 : f32
      %27 = vector.broadcast %cst_21 : f32 to vector<1x512xf32>
      %c0_22 = arith.constant 0 : index
      %c0_23 = arith.constant 0 : index
      %28 = vector.load %arg13[%c0_22, %c0_23] : memref<1x512xf32, #tpu.memory_space<vmem>>, vector<1x512xf32>
      tpu.vector_store %arg13[%c0_22, %c0_23], %27 {strides = array<i32>} : memref<1x512xf32, #tpu.memory_space<vmem>>, vector<1x512xf32>,
    } else {
    }
    %c1_i32 = arith.constant 1 : i32
    %3 = arith.cmpi slt, %arg0, %c1_i32 : i32
    %4 = arith.extui %3 : i1 to i32
    %c0_i32_1 = arith.constant 0 : i32
    %5 = arith.cmpi ne, %4, %c0_i32_1 : i32
    scf.if %5 {
      %c512_i32 = arith.constant 512 : i32
      %17 = arith.muli %arg0, %c512_i32 : i32
      %18 = tpu.iota {dimensions = array<i32: 1>} : vector<1x512xi32>
      %19 = tpu.iota {dimensions = array<i32: 0>} : vector<5x512xi32>
      %cst = arith.constant 0.000000e+00 : f32
      %20 = vector.broadcast %cst : f32 to vector<1x512xf32>
      %c0_i32_8 = arith.constant 0 : i32
      %c512_i32_9 = arith.constant 512 : i32
      %21 = arith.muli %c0_i32_8, %c512_i32_9 : i32
      %22 = tpu.assume_multiple %21, 512 : i32
      %c0 = arith.constant 0 : index
      %23 = arith.index_cast %22 : i32 to index
      %24 = vector.load %arg1[%c0, %23] : memref<5x512xf32, #tpu.memory_space<vmem>>, vector<5x512xf32>
      %c0_10 = arith.constant 0 : index
      %25 = arith.index_cast %22 : i32 to index
      %26 = vector.load %arg2[%c0_10, %25] : memref<1x512xi32, #tpu.memory_space<vmem>>, vector<1x512xi32>
      %27 = arith.addi %17, %22 : i32
      %28 = vector.broadcast %27 : i32 to vector<1x512xi32>
      %29 = arith.addi %28, %18 : vector<1x512xi32>
      %c48_i32 = arith.constant 48 : i32
      %30 = vector.broadcast %c48_i32 : i32 to vector<1x512xi32>
      %31 = arith.cmpi slt, %29, %30 : vector<1x512xi32>
      %c0_i32_11 = arith.constant 0 : i32
      %32 = vector.broadcast %c0_i32_11 : i32 to vector<1x512xi32>
      %33 = arith.cmpi sge, %26, %32 : vector<1x512xi32>
      %34 = arith.andi %31, %33 : vector<1x512xi1>
      %cst_12 = arith.constant dense<0xFF800000> : vector<512xf32>
      %35 = vector.multi_reduction <maximumf>, %24, %cst_12 [0] : vector<5x512xf32> to vector<512xf32>
      %36 = vector.shape_cast %35 : vector<512xf32> to vector<1x512xf32>
      %37 = vector.broadcast %36 : vector<1x512xf32> to vector<5x512xf32>
      %38 = arith.subf %24, %37 : vector<5x512xf32>
      %39 = math.exp %38 : vector<5x512xf32>
      %cst_13 = arith.constant dense<0.000000e+00> : vector<512xf32>
      %40 = vector.multi_reduction <add>, %39, %cst_13 [0] : vector<5x512xf32> to vector<512xf32>
      %41 = vector.shape_cast %40 : vector<512xf32> to vector<1x512xf32>
      %42 = math.log %41 : vector<1x512xf32>
      %43 = arith.addf %36, %42 : vector<1x512xf32>
      %44 = vector.broadcast %26 : vector<1x512xi32> to vector<5x512xi32>
      %45 = arith.cmpi eq, %19, %44 : vector<5x512xi32>
      %cst_14 = arith.constant 0.000000e+00 : f32
      %46 = vector.broadcast %cst_14 : f32 to vector<5x512xf32>
      %47 = arith.select %45, %24, %46 : vector<5x512xi1>, vector<5x512xf32>
      %cst_15 = arith.constant dense<0.000000e+00> : vector<512xf32>
      %48 = vector.multi_reduction <add>, %47, %cst_15 [0] : vector<5x512xf32> to vector<512xf32>
      %49 = vector.shape_cast %48 : vector<512xf32> to vector<1x512xf32>
      %50 = arith.subf %43, %49 : vector<1x512xf32>
      %cst_16 = arith.constant 0.000000e+00 : f32
      %51 = vector.broadcast %cst_16 : f32 to vector<1x512xf32>
      %52 = arith.select %34, %50, %51 : vector<1x512xi1>, vector<1x512xf32>
      %53 = arith.addf %20, %52 : vector<1x512xf32>
      %54 = arith.extui %34 : vector<1x512xi1> to vector<1x512xi32>
      %55 = arith.sitofp %54 : vector<1x512xi32> to vector<1x512xf32>
      %56 = arith.addf %20, %55 : vector<1x512xf32>
      %c1_i32_17 = arith.constant 1 : i32
      %c0_18 = arith.constant 0 : index
      %c0_19 = arith.constant 0 : index
      %57 = vector.load %arg8[%c0_18, %c0_19] : memref<1x512xf32, #tpu.memory_space<vmem>>, vector<1x512xf32>
      %58 = arith.addf %57, %53 : vector<1x512xf32>
      %c0_20 = arith.constant 0 : index
      %c0_21 = arith.constant 0 : index
      %59 = vector.load %arg8[%c0_20, %c0_21] : memref<1x512xf32, #tpu.memory_space<vmem>>, vector<1x512xf32>
      tpu.vector_store %arg8[%c0_20, %c0_21], %58 {strides = array<i32>} : memref<1x512xf32, #tpu.memory_space<vmem>>, vector<1x512xf32>,
      %c0_22 = arith.constant 0 : index
      %c0_23 = arith.constant 0 : index
      %60 = vector.load %arg9[%c0_22, %c0_23] : memref<1x512xf32, #tpu.memory_space<vmem>>, vector<1x512xf32>
      %61 = arith.addf %60, %56 : vector<1x512xf32>
      %c0_24 = arith.constant 0 : index
      %c0_25 = arith.constant 0 : index
      %62 = vector.load %arg9[%c0_24, %c0_25] : memref<1x512xf32, #tpu.memory_space<vmem>>, vector<1x512xf32>
      tpu.vector_store %arg9[%c0_24, %c0_25], %61 {strides = array<i32>} : memref<1x512xf32, #tpu.memory_space<vmem>>, vector<1x512xf32>,
    } else {
    }
    %c1_i32_2 = arith.constant 1 : i32
    %6 = arith.cmpi sge, %arg0, %c1_i32_2 : i32
    %c2_i32 = arith.constant 2 : i32
    %7 = arith.cmpi slt, %arg0, %c2_i32 : i32
    %8 = arith.andi %6, %7 : i1
    %9 = arith.extui %8 : i1 to i32
    %c0_i32_3 = arith.constant 0 : i32
    %10 = arith.cmpi ne, %9, %c0_i32_3 : i32
    scf.if %10 {
      %c1_i32_8 = arith.constant 1 : i32
      %17 = arith.subi %arg0, %c1_i32_8 : i32
      %c1536_i32 = arith.constant 1536 : i32
      %18 = arith.muli %17, %c1536_i32 : i32
      %19 = tpu.iota {dimensions = array<i32: 1>} : vector<1x512xi32>
      %20 = tpu.iota {dimensions = array<i32: 0>} : vector<5x512xi32>
      %cst = arith.constant 0.000000e+00 : f32
      %21 = vector.broadcast %cst : f32 to vector<1x512xf32>
      %c0_i32_9 = arith.constant 0 : i32
      %c512_i32 = arith.constant 512 : i32
      %22 = arith.muli %c0_i32_9, %c512_i32 : i32
      %23 = tpu.assume_multiple %22, 512 : i32
      %c0 = arith.constant 0 : index
      %24 = arith.index_cast %23 : i32 to index
      %25 = vector.load %arg3[%c0, %24] : memref<5x1536xf32, #tpu.memory_space<vmem>>, vector<5x512xf32>
      %c0_10 = arith.constant 0 : index
      %26 = arith.index_cast %23 : i32 to index
      %27 = vector.load %arg4[%c0_10, %26] : memref<1x1536xi32, #tpu.memory_space<vmem>>, vector<1x512xi32>
      %28 = arith.addi %18, %23 : i32
      %29 = vector.broadcast %28 : i32 to vector<1x512xi32>
      %30 = arith.addi %29, %19 : vector<1x512xi32>
      %c1152_i32 = arith.constant 1152 : i32
      %31 = vector.broadcast %c1152_i32 : i32 to vector<1x512xi32>
      %32 = arith.cmpi slt, %30, %31 : vector<1x512xi32>
      %c0_i32_11 = arith.constant 0 : i32
      %33 = vector.broadcast %c0_i32_11 : i32 to vector<1x512xi32>
      %34 = arith.cmpi sge, %27, %33 : vector<1x512xi32>
      %35 = arith.andi %32, %34 : vector<1x512xi1>
      %cst_12 = arith.constant dense<0xFF800000> : vector<512xf32>
      %36 = vector.multi_reduction <maximumf>, %25, %cst_12 [0] : vector<5x512xf32> to vector<512xf32>
      %37 = vector.shape_cast %36 : vector<512xf32> to vector<1x512xf32>
      %38 = vector.broadcast %37 : vector<1x512xf32> to vector<5x512xf32>
      %39 = arith.subf %25, %38 : vector<5x512xf32>
      %40 = math.exp %39 : vector<5x512xf32>
      %cst_13 = arith.constant dense<0.000000e+00> : vector<512xf32>
      %41 = vector.multi_reduction <add>, %40, %cst_13 [0] : vector<5x512xf32> to vector<512xf32>
      %42 = vector.shape_cast %41 : vector<512xf32> to vector<1x512xf32>
      %43 = math.log %42 : vector<1x512xf32>
      %44 = arith.addf %37, %43 : vector<1x512xf32>
      %45 = vector.broadcast %27 : vector<1x512xi32> to vector<5x512xi32>
      %46 = arith.cmpi eq, %20, %45 : vector<5x512xi32>
      %cst_14 = arith.constant 0.000000e+00 : f32
      %47 = vector.broadcast %cst_14 : f32 to vector<5x512xf32>
      %48 = arith.select %46, %25, %47 : vector<5x512xi1>, vector<5x512xf32>
      %cst_15 = arith.constant dense<0.000000e+00> : vector<512xf32>
      %49 = vector.multi_reduction <add>, %48, %cst_15 [0] : vector<5x512xf32> to vector<512xf32>
      %50 = vector.shape_cast %49 : vector<512xf32> to vector<1x512xf32>
      %51 = arith.subf %44, %50 : vector<1x512xf32>
      %cst_16 = arith.constant 0.000000e+00 : f32
      %52 = vector.broadcast %cst_16 : f32 to vector<1x512xf32>
      %53 = arith.select %35, %51, %52 : vector<1x512xi1>, vector<1x512xf32>
      %54 = arith.addf %21, %53 : vector<1x512xf32>
      %55 = arith.extui %35 : vector<1x512xi1> to vector<1x512xi32>
      %56 = arith.sitofp %55 : vector<1x512xi32> to vector<1x512xf32>
      %57 = arith.addf %21, %56 : vector<1x512xf32>
      %c1_i32_17 = arith.constant 1 : i32
      %c512_i32_18 = arith.constant 512 : i32
      %58 = arith.muli %c1_i32_17, %c512_i32_18 : i32
      %59 = tpu.assume_multiple %58, 512 : i32
      %c0_19 = arith.constant 0 : index
      %60 = arith.index_cast %59 : i32 to index
      %61 = vector.load %arg3[%c0_19, %60] : memref<5x1536xf32, #tpu.memory_space<vmem>>, vector<5x512xf32>
      %c0_20 = arith.constant 0 : index
      %62 = arith.index_cast %59 : i32 to index
      %63 = vector.load %arg4[%c0_20, %62] : memref<1x1536xi32, #tpu.memory_space<vmem>>, vector<1x512xi32>
      %64 = arith.addi %18, %59 : i32
      %65 = vector.broadcast %64 : i32 to vector<1x512xi32>
      %66 = arith.addi %65, %19 : vector<1x512xi32>
      %c1152_i32_21 = arith.constant 1152 : i32
      %67 = vector.broadcast %c1152_i32_21 : i32 to vector<1x512xi32>
      %68 = arith.cmpi slt, %66, %67 : vector<1x512xi32>
      %c0_i32_22 = arith.constant 0 : i32
      %69 = vector.broadcast %c0_i32_22 : i32 to vector<1x512xi32>
      %70 = arith.cmpi sge, %63, %69 : vector<1x512xi32>
      %71 = arith.andi %68, %70 : vector<1x512xi1>
      %cst_23 = arith.constant dense<0xFF800000> : vector<512xf32>
      %72 = vector.multi_reduction <maximumf>, %61, %cst_23 [0] : vector<5x512xf32> to vector<512xf32>
      %73 = vector.shape_cast %72 : vector<512xf32> to vector<1x512xf32>
      %74 = vector.broadcast %73 : vector<1x512xf32> to vector<5x512xf32>
      %75 = arith.subf %61, %74 : vector<5x512xf32>
      %76 = math.exp %75 : vector<5x512xf32>
      %cst_24 = arith.constant dense<0.000000e+00> : vector<512xf32>
      %77 = vector.multi_reduction <add>, %76, %cst_24 [0] : vector<5x512xf32> to vector<512xf32>
      %78 = vector.shape_cast %77 : vector<512xf32> to vector<1x512xf32>
      %79 = math.log %78 : vector<1x512xf32>
      %80 = arith.addf %73, %79 : vector<1x512xf32>
      %81 = vector.broadcast %63 : vector<1x512xi32> to vector<5x512xi32>
      %82 = arith.cmpi eq, %20, %81 : vector<5x512xi32>
      %cst_25 = arith.constant 0.000000e+00 : f32
      %83 = vector.broadcast %cst_25 : f32 to vector<5x512xf32>
      %84 = arith.select %82, %61, %83 : vector<5x512xi1>, vector<5x512xf32>
      %cst_26 = arith.constant dense<0.000000e+00> : vector<512xf32>
      %85 = vector.multi_reduction <add>, %84, %cst_26 [0] : vector<5x512xf32> to vector<512xf32>
      %86 = vector.shape_cast %85 : vector<512xf32> to vector<1x512xf32>
      %87 = arith.subf %80, %86 : vector<1x512xf32>
      %cst_27 = arith.constant 0.000000e+00 : f32
      %88 = vector.broadcast %cst_27 : f32 to vector<1x512xf32>
      %89 = arith.select %71, %87, %88 : vector<1x512xi1>, vector<1x512xf32>
      %90 = arith.addf %54, %89 : vector<1x512xf32>
      %91 = arith.extui %71 : vector<1x512xi1> to vector<1x512xi32>
      %92 = arith.sitofp %91 : vector<1x512xi32> to vector<1x512xf32>
      %93 = arith.addf %57, %92 : vector<1x512xf32>
      %c2_i32_28 = arith.constant 2 : i32
      %c512_i32_29 = arith.constant 512 : i32
      %94 = arith.muli %c2_i32_28, %c512_i32_29 : i32
      %95 = tpu.assume_multiple %94, 512 : i32
      %c0_30 = arith.constant 0 : index
      %96 = arith.index_cast %95 : i32 to index
      %97 = vector.load %arg3[%c0_30, %96] : memref<5x1536xf32, #tpu.memory_space<vmem>>, vector<5x512xf32>
      %c0_31 = arith.constant 0 : index
      %98 = arith.index_cast %95 : i32 to index
      %99 = vector.load %arg4[%c0_31, %98] : memref<1x1536xi32, #tpu.memory_space<vmem>>, vector<1x512xi32>
      %100 = arith.addi %18, %95 : i32
      %101 = vector.broadcast %100 : i32 to vector<1x512xi32>
      %102 = arith.addi %101, %19 : vector<1x512xi32>
      %c1152_i32_32 = arith.constant 1152 : i32
      %103 = vector.broadcast %c1152_i32_32 : i32 to vector<1x512xi32>
      %104 = arith.cmpi slt, %102, %103 : vector<1x512xi32>
      %c0_i32_33 = arith.constant 0 : i32
      %105 = vector.broadcast %c0_i32_33 : i32 to vector<1x512xi32>
      %106 = arith.cmpi sge, %99, %105 : vector<1x512xi32>
      %107 = arith.andi %104, %106 : vector<1x512xi1>
      %cst_34 = arith.constant dense<0xFF800000> : vector<512xf32>
      %108 = vector.multi_reduction <maximumf>, %97, %cst_34 [0] : vector<5x512xf32> to vector<512xf32>
      %109 = vector.shape_cast %108 : vector<512xf32> to vector<1x512xf32>
      %110 = vector.broadcast %109 : vector<1x512xf32> to vector<5x512xf32>
      %111 = arith.subf %97, %110 : vector<5x512xf32>
      %112 = math.exp %111 : vector<5x512xf32>
      %cst_35 = arith.constant dense<0.000000e+00> : vector<512xf32>
      %113 = vector.multi_reduction <add>, %112, %cst_35 [0] : vector<5x512xf32> to vector<512xf32>
      %114 = vector.shape_cast %113 : vector<512xf32> to vector<1x512xf32>
      %115 = math.log %114 : vector<1x512xf32>
      %116 = arith.addf %109, %115 : vector<1x512xf32>
      %117 = vector.broadcast %99 : vector<1x512xi32> to vector<5x512xi32>
      %118 = arith.cmpi eq, %20, %117 : vector<5x512xi32>
      %cst_36 = arith.constant 0.000000e+00 : f32
      %119 = vector.broadcast %cst_36 : f32 to vector<5x512xf32>
      %120 = arith.select %118, %97, %119 : vector<5x512xi1>, vector<5x512xf32>
      %cst_37 = arith.constant dense<0.000000e+00> : vector<512xf32>
      %121 = vector.multi_reduction <add>, %120, %cst_37 [0] : vector<5x512xf32> to vector<512xf32>
      %122 = vector.shape_cast %121 : vector<512xf32> to vector<1x512xf32>
      %123 = arith.subf %116, %122 : vector<1x512xf32>
      %cst_38 = arith.constant 0.000000e+00 : f32
      %124 = vector.broadcast %cst_38 : f32 to vector<1x512xf32>
      %125 = arith.select %107, %123, %124 : vector<1x512xi1>, vector<1x512xf32>
      %126 = arith.addf %90, %125 : vector<1x512xf32>
      %127 = arith.extui %107 : vector<1x512xi1> to vector<1x512xi32>
      %128 = arith.sitofp %127 : vector<1x512xi32> to vector<1x512xf32>
      %129 = arith.addf %93, %128 : vector<1x512xf32>
      %c3_i32 = arith.constant 3 : i32
      %c0_39 = arith.constant 0 : index
      %c0_40 = arith.constant 0 : index
      %130 = vector.load %arg10[%c0_39, %c0_40] : memref<1x512xf32, #tpu.memory_space<vmem>>, vector<1x512xf32>
      %131 = arith.addf %130, %126 : vector<1x512xf32>
      %c0_41 = arith.constant 0 : index
      %c0_42 = arith.constant 0 : index
      %132 = vector.load %arg10[%c0_41, %c0_42] : memref<1x512xf32, #tpu.memory_space<vmem>>, vector<1x512xf32>
      tpu.vector_store %arg10[%c0_41, %c0_42], %131 {strides = array<i32>} : memref<1x512xf32, #tpu.memory_space<vmem>>, vector<1x512xf32>,
      %c0_43 = arith.constant 0 : index
      %c0_44 = arith.constant 0 : index
      %133 = vector.load %arg11[%c0_43, %c0_44] : memref<1x512xf32, #tpu.memory_space<vmem>>, vector<1x512xf32>
      %134 = arith.addf %133, %129 : vector<1x512xf32>
      %c0_45 = arith.constant 0 : index
      %c0_46 = arith.constant 0 : index
      %135 = vector.load %arg11[%c0_45, %c0_46] : memref<1x512xf32, #tpu.memory_space<vmem>>, vector<1x512xf32>
      tpu.vector_store %arg11[%c0_45, %c0_46], %134 {strides = array<i32>} : memref<1x512xf32, #tpu.memory_space<vmem>>, vector<1x512xf32>,
    } else {
    }
    %c2_i32_4 = arith.constant 2 : i32
    %11 = arith.cmpi sge, %arg0, %c2_i32_4 : i32
    %12 = arith.extui %11 : i1 to i32
    %c0_i32_5 = arith.constant 0 : i32
    %13 = arith.cmpi ne, %12, %c0_i32_5 : i32
    scf.if %13 {
      %c1_i32_8 = arith.constant 1 : i32
      %17 = arith.subi %arg0, %c1_i32_8 : i32
      %c1_i32_9 = arith.constant 1 : i32
      %18 = arith.subi %17, %c1_i32_9 : i32
      %c512_i32 = arith.constant 512 : i32
      %19 = arith.muli %18, %c512_i32 : i32
      %20 = tpu.iota {dimensions = array<i32: 1>} : vector<1x512xi32>
      %21 = tpu.iota {dimensions = array<i32: 0>} : vector<3x512xi32>
      %cst = arith.constant 0.000000e+00 : f32
      %22 = vector.broadcast %cst : f32 to vector<1x512xf32>
      %c0_i32_10 = arith.constant 0 : i32
      %c512_i32_11 = arith.constant 512 : i32
      %23 = arith.muli %c0_i32_10, %c512_i32_11 : i32
      %24 = tpu.assume_multiple %23, 512 : i32
      %c0 = arith.constant 0 : index
      %25 = arith.index_cast %24 : i32 to index
      %26 = vector.load %arg5[%c0, %25] : memref<3x512xf32, #tpu.memory_space<vmem>>, vector<3x512xf32>
      %c0_12 = arith.constant 0 : index
      %27 = arith.index_cast %24 : i32 to index
      %28 = vector.load %arg6[%c0_12, %27] : memref<1x512xi32, #tpu.memory_space<vmem>>, vector<1x512xi32>
      %29 = arith.addi %19, %24 : i32
      %30 = vector.broadcast %29 : i32 to vector<1x512xi32>
      %31 = arith.addi %30, %20 : vector<1x512xi32>
      %c2_i32_13 = arith.constant 2 : i32
      %32 = vector.broadcast %c2_i32_13 : i32 to vector<1x512xi32>
      %33 = arith.cmpi slt, %31, %32 : vector<1x512xi32>
      %cst_14 = arith.constant dense<0xFF800000> : vector<512xf32>
      %34 = vector.multi_reduction <maximumf>, %26, %cst_14 [0] : vector<3x512xf32> to vector<512xf32>
      %35 = vector.shape_cast %34 : vector<512xf32> to vector<1x512xf32>
      %36 = vector.broadcast %35 : vector<1x512xf32> to vector<3x512xf32>
      %37 = arith.subf %26, %36 : vector<3x512xf32>
      %38 = math.exp %37 : vector<3x512xf32>
      %cst_15 = arith.constant dense<0.000000e+00> : vector<512xf32>
      %39 = vector.multi_reduction <add>, %38, %cst_15 [0] : vector<3x512xf32> to vector<512xf32>
      %40 = vector.shape_cast %39 : vector<512xf32> to vector<1x512xf32>
      %41 = math.log %40 : vector<1x512xf32>
      %42 = arith.addf %35, %41 : vector<1x512xf32>
      %43 = vector.broadcast %28 : vector<1x512xi32> to vector<3x512xi32>
      %44 = arith.cmpi eq, %21, %43 : vector<3x512xi32>
      %cst_16 = arith.constant 0.000000e+00 : f32
      %45 = vector.broadcast %cst_16 : f32 to vector<3x512xf32>
      %46 = arith.select %44, %26, %45 : vector<3x512xi1>, vector<3x512xf32>
      %cst_17 = arith.constant dense<0.000000e+00> : vector<512xf32>
      %47 = vector.multi_reduction <add>, %46, %cst_17 [0] : vector<3x512xf32> to vector<512xf32>
      %48 = vector.shape_cast %47 : vector<512xf32> to vector<1x512xf32>
      %49 = arith.subf %42, %48 : vector<1x512xf32>
      %cst_18 = arith.constant 0.000000e+00 : f32
      %50 = vector.broadcast %cst_18 : f32 to vector<1x512xf32>
      %51 = arith.select %33, %49, %50 : vector<1x512xi1>, vector<1x512xf32>
      %52 = arith.addf %22, %51 : vector<1x512xf32>
      %53 = arith.extui %33 : vector<1x512xi1> to vector<1x512xi32>
      %54 = arith.sitofp %53 : vector<1x512xi32> to vector<1x512xf32>
      %55 = arith.addf %22, %54 : vector<1x512xf32>
      %c1_i32_19 = arith.constant 1 : i32
      %c0_20 = arith.constant 0 : index
      %c0_21 = arith.constant 0 : index
      %56 = vector.load %arg12[%c0_20, %c0_21] : memref<1x512xf32, #tpu.memory_space<vmem>>, vector<1x512xf32>
      %57 = arith.addf %56, %52 : vector<1x512xf32>
      %c0_22 = arith.constant 0 : index
      %c0_23 = arith.constant 0 : index
      %58 = vector.load %arg12[%c0_22, %c0_23] : memref<1x512xf32, #tpu.memory_space<vmem>>, vector<1x512xf32>
      tpu.vector_store %arg12[%c0_22, %c0_23], %57 {strides = array<i32>} : memref<1x512xf32, #tpu.memory_space<vmem>>, vector<1x512xf32>,
      %c0_24 = arith.constant 0 : index
      %c0_25 = arith.constant 0 : index
      %59 = vector.load %arg13[%c0_24, %c0_25] : memref<1x512xf32, #tpu.memory_space<vmem>>, vector<1x512xf32>
      %60 = arith.addf %59, %55 : vector<1x512xf32>
      %c0_26 = arith.constant 0 : index
      %c0_27 = arith.constant 0 : index
      %61 = vector.load %arg13[%c0_26, %c0_27] : memref<1x512xf32, #tpu.memory_space<vmem>>, vector<1x512xf32>
      tpu.vector_store %arg13[%c0_26, %c0_27], %60 {strides = array<i32>} : memref<1x512xf32, #tpu.memory_space<vmem>>, vector<1x512xf32>,
    } else {
    }
    %c2_i32_6 = arith.constant 2 : i32
    %14 = arith.cmpi eq, %arg0, %c2_i32_6 : i32
    %15 = arith.extui %14 : i1 to i32
    %c0_i32_7 = arith.constant 0 : i32
    %16 = arith.cmpi ne, %15, %c0_i32_7 : i32
    scf.if %16 {
      %c0 = arith.constant 0 : index
      %c0_8 = arith.constant 0 : index
      %17 = vector.load %arg8[%c0, %c0_8] : memref<1x512xf32, #tpu.memory_space<vmem>>, vector<1x512xf32>
      %cst = arith.constant dense<0.000000e+00> : vector<1xf32>
      %18 = vector.multi_reduction <add>, %17, %cst [1] : vector<1x512xf32> to vector<1xf32>
      %19 = vector.shape_cast %18 : vector<1xf32> to vector<1x1xf32>
      %c0_9 = arith.constant 0 : index
      %c0_10 = arith.constant 0 : index
      %20 = vector.load %arg10[%c0_9, %c0_10] : memref<1x512xf32, #tpu.memory_space<vmem>>, vector<1x512xf32>
      %cst_11 = arith.constant dense<0.000000e+00> : vector<1xf32>
      %21 = vector.multi_reduction <add>, %20, %cst_11 [1] : vector<1x512xf32> to vector<1xf32>
      %22 = vector.shape_cast %21 : vector<1xf32> to vector<1x1xf32>
      %c0_12 = arith.constant 0 : index
      %c0_13 = arith.constant 0 : index
      %23 = vector.load %arg12[%c0_12, %c0_13] : memref<1x512xf32, #tpu.memory_space<vmem>>, vector<1x512xf32>
      %cst_14 = arith.constant dense<0.000000e+00> : vector<1xf32>
      %24 = vector.multi_reduction <add>, %23, %cst_14 [1] : vector<1x512xf32> to vector<1xf32>
      %25 = vector.shape_cast %24 : vector<1xf32> to vector<1x1xf32>
      %c0_15 = arith.constant 0 : index
      %c0_16 = arith.constant 0 : index
      %26 = vector.load %arg9[%c0_15, %c0_16] : memref<1x512xf32, #tpu.memory_space<vmem>>, vector<1x512xf32>
      %cst_17 = arith.constant dense<0.000000e+00> : vector<1xf32>
      %27 = vector.multi_reduction <add>, %26, %cst_17 [1] : vector<1x512xf32> to vector<1xf32>
      %28 = vector.shape_cast %27 : vector<1xf32> to vector<1x1xf32>
      %cst_18 = arith.constant 1.000000e+00 : f32
      %29 = vector.broadcast %cst_18 : f32 to vector<1x1xf32>
      %30 = arith.maximumf %28, %29 : vector<1x1xf32>
      %c0_19 = arith.constant 0 : index
      %c0_20 = arith.constant 0 : index
      %31 = vector.load %arg11[%c0_19, %c0_20] : memref<1x512xf32, #tpu.memory_space<vmem>>, vector<1x512xf32>
      %cst_21 = arith.constant dense<0.000000e+00> : vector<1xf32>
      %32 = vector.multi_reduction <add>, %31, %cst_21 [1] : vector<1x512xf32> to vector<1xf32>
      %33 = vector.shape_cast %32 : vector<1xf32> to vector<1x1xf32>
      %cst_22 = arith.constant 1.000000e+00 : f32
      %34 = vector.broadcast %cst_22 : f32 to vector<1x1xf32>
      %35 = arith.maximumf %33, %34 : vector<1x1xf32>
      %c0_23 = arith.constant 0 : index
      %c0_24 = arith.constant 0 : index
      %36 = vector.load %arg13[%c0_23, %c0_24] : memref<1x512xf32, #tpu.memory_space<vmem>>, vector<1x512xf32>
      %cst_25 = arith.constant dense<0.000000e+00> : vector<1xf32>
      %37 = vector.multi_reduction <add>, %36, %cst_25 [1] : vector<1x512xf32> to vector<1xf32>
      %38 = vector.shape_cast %37 : vector<1xf32> to vector<1x1xf32>
      %cst_26 = arith.constant 1.000000e+00 : f32
      %39 = vector.broadcast %cst_26 : f32 to vector<1x1xf32>
      %40 = arith.maximumf %38, %39 : vector<1x1xf32>
      %41 = arith.divf %19, %30 : vector<1x1xf32>
      %42 = arith.divf %22, %35 : vector<1x1xf32>
      %cst_27 = arith.constant 5.000000e+00 : f32
      %43 = vector.broadcast %cst_27 : f32 to vector<1x1xf32>
      %44 = arith.mulf %43, %42 : vector<1x1xf32>
      %45 = arith.addf %41, %44 : vector<1x1xf32>
      %46 = arith.divf %25, %40 : vector<1x1xf32>
      %cst_28 = arith.constant 1.000000e+00 : f32
      %47 = vector.broadcast %cst_28 : f32 to vector<1x1xf32>
      %48 = arith.mulf %47, %46 : vector<1x1xf32>
      %49 = arith.addf %45, %48 : vector<1x1xf32>
      %c0_29 = arith.constant 0 : index
      %c0_30 = arith.constant 0 : index
      %50 = vector.load %arg7[%c0_29, %c0_30] : memref<1x1xf32, #tpu.memory_space<vmem>>, vector<1x1xf32>
      tpu.vector_store %arg7[%c0_29, %c0_30], %49 {strides = array<i32>} : memref<1x1xf32, #tpu.memory_space<vmem>>, vector<1x1xf32>,
    } else {
    }
    return
  }
  func.func @transform_0(%arg0: i32) -> (i32, i32) {
    %c0_i32 = arith.constant 0 : i32
    %0 = arith.subi %arg0, %c0_i32 : i32
    %c0_i32_0 = arith.constant 0 : i32
    %1 = arith.minsi %0, %c0_i32_0 : i32
    %c0_i32_1 = arith.constant 0 : i32
    %2 = arith.maxsi %1, %c0_i32_1 : i32
    %c0_i32_2 = arith.constant 0 : i32
    %c0_i32_3 = arith.constant 0 : i32
    return %c0_i32_2, %2 : i32, i32
  }
  func.func @transform_1(%arg0: i32) -> (i32, i32) {
    %c0_i32 = arith.constant 0 : i32
    %0 = arith.subi %arg0, %c0_i32 : i32
    %c0_i32_0 = arith.constant 0 : i32
    %1 = arith.minsi %0, %c0_i32_0 : i32
    %c0_i32_1 = arith.constant 0 : i32
    %2 = arith.maxsi %1, %c0_i32_1 : i32
    %c0_i32_2 = arith.constant 0 : i32
    %c0_i32_3 = arith.constant 0 : i32
    return %c0_i32_2, %2 : i32, i32
  }
  func.func @transform_2(%arg0: i32) -> (i32, i32) {
    %c1_i32 = arith.constant 1 : i32
    %0 = arith.subi %arg0, %c1_i32 : i32
    %c0_i32 = arith.constant 0 : i32
    %1 = arith.minsi %0, %c0_i32 : i32
    %c0_i32_0 = arith.constant 0 : i32
    %2 = arith.maxsi %1, %c0_i32_0 : i32
    %c0_i32_1 = arith.constant 0 : i32
    %c0_i32_2 = arith.constant 0 : i32
    return %c0_i32_1, %2 : i32, i32
  }
  func.func @transform_3(%arg0: i32) -> (i32, i32) {
    %c1_i32 = arith.constant 1 : i32
    %0 = arith.subi %arg0, %c1_i32 : i32
    %c0_i32 = arith.constant 0 : i32
    %1 = arith.minsi %0, %c0_i32 : i32
    %c0_i32_0 = arith.constant 0 : i32
    %2 = arith.maxsi %1, %c0_i32_0 : i32
    %c0_i32_1 = arith.constant 0 : i32
    %c0_i32_2 = arith.constant 0 : i32
    return %c0_i32_1, %2 : i32, i32
  }
  func.func @transform_4(%arg0: i32) -> (i32, i32) {
    %c2_i32 = arith.constant 2 : i32
    %0 = arith.subi %arg0, %c2_i32 : i32
    %c0_i32 = arith.constant 0 : i32
    %1 = arith.minsi %0, %c0_i32 : i32
    %c0_i32_0 = arith.constant 0 : i32
    %2 = arith.maxsi %1, %c0_i32_0 : i32
    %c0_i32_1 = arith.constant 0 : i32
    %c0_i32_2 = arith.constant 0 : i32
    return %c0_i32_1, %2 : i32, i32
  }
  func.func @transform_5(%arg0: i32) -> (i32, i32) {
    %c2_i32 = arith.constant 2 : i32
    %0 = arith.subi %arg0, %c2_i32 : i32
    %c0_i32 = arith.constant 0 : i32
    %1 = arith.minsi %0, %c0_i32 : i32
    %c0_i32_0 = arith.constant 0 : i32
    %2 = arith.maxsi %1, %c0_i32_0 : i32
    %c0_i32_1 = arith.constant 0 : i32
    %c0_i32_2 = arith.constant 0 : i32
    return %c0_i32_1, %2 : i32, i32
  }
  func.func @transform_6(%arg0: i32) -> (i32, i32) {
    %c0_i32 = arith.constant 0 : i32
    %c0_i32_0 = arith.constant 0 : i32
    %c0_i32_1 = arith.constant 0 : i32
    return %c0_i32, %c0_i32_0 : i32, i32
  }
}

</mosaic_0001>

<llo_original>
// kernel: train_loss_discrete.1
$region0: #{train_loss_discrete.1}
  #allocation0 [shape = 'u32[]', space=smem, size = 0x4, offset = 0x4, fixed_abs, tag = 'smem constant byte address 0x4 - core index']
  #allocation1 [shape = 'u32[72,128]{1,0:T(1,128)}', space=vmem, size = 0x9000, scoped, tag = 'internal scratch']
  #allocation2 [shape = 'f32[1,512]{1,0:T(1,128)}', space=vmem, size = 0x800, scoped, tag = 'scratch operand']
  #allocation3 [shape = 'f32[1,512]{1,0:T(1,128)}', space=vmem, size = 0x800, scoped, tag = 'scratch operand']
  #allocation4 [shape = 'f32[1,512]{1,0:T(1,128)}', space=vmem, size = 0x800, scoped, tag = 'scratch operand']
  #allocation5 [shape = 'f32[1,512]{1,0:T(1,128)}', space=vmem, size = 0x800, scoped, tag = 'scratch operand']
  #allocation6 [shape = 'f32[1,512]{1,0:T(1,128)}', space=vmem, size = 0x800, scoped, tag = 'scratch operand']
  #allocation7 [shape = 'f32[1,512]{1,0:T(1,128)}', space=vmem, size = 0x800, scoped, tag = 'scratch operand']
  %s0 = inlined_call_operand.vmem [shape: f32[5,48], index: 0, kind: input, shape index: {}]
  %s1 = inlined_call_operand.vmem [shape: s32[1,48], index: 1, kind: input, shape index: {}]
  %s2 = inlined_call_operand.vmem [shape: f32[5,1152], index: 2, kind: input, shape index: {}]
  %s3 = inlined_call_operand.vmem [shape: s32[1,1152], index: 3, kind: input, shape index: {}]
  %s4 = inlined_call_operand.vmem [shape: f32[3,2], index: 4, kind: input, shape index: {}]
  %s5 = inlined_call_operand.vmem [shape: s32[1,2], index: 5, kind: input, shape index: {}]
  %s6 = inlined_call_operand.hbm [shape: f32[1,1], index: 6, kind: output, shape index: {}]
  %s7 = sld [smem:[#allocation0]]
  $region77: #{train_loss_discrete.1} parent=0
    _
  %s9 = ssub.s32 1, %s7
  %s10 = scalar_select 0, %s9, %s7
  $region1: #{train_loss_discrete.1} parent=0
    #allocation8 [shape = 'u8[512]{0}', space=vmem, size = 0x400, scoped, tag = 'output window, operand 0, single buffered']
    #allocation9 [shape = 's32[2]{0}', space=sflag, size = 0x8, scoped, tag = 'scoped memory for train_loss_discrete.1']
    %11 = vsyncpa [#allocation9], 0
    loop: start=0, step=1, limit=5
    $region2: #{train_loss_discrete.1} parent=1 // loop_pre_header
      _
    $region3: #{train_loss_discrete.1} parent=1 // loop_header
      %s13 = sphi 0, %s17
      %p14 = scmp.ge.s32.totalorder %s13, 5
      %s31 = sphi 0, %s33
      %s34 = sphi 0, %s31
      %s35 = sphi 0, %s34
      %s51 = sphi 0, %s35
      %s65 = sphi 0, %s67
      %s68 = sphi 0, %s65
      %s69 = sphi 0, %s68
      %s85 = sphi 0, %s69
      %s101 = sphi 0, %s103
      %s104 = sphi 0, %s101
      %s105 = sphi 0, %s104
      %s121 = sphi 0, %s105
      %s137 = sphi 0, %s139
      %s140 = sphi 0, %s137
      %s141 = sphi 0, %s140
      %s157 = sphi 0, %s141
      %s173 = sphi 0, %s175
      %s176 = sphi 0, %s173
      %s177 = sphi 0, %s176
      %s193 = sphi 0, %s177
      %s209 = sphi 0, %s211
      %s212 = sphi 0, %s209
      %s213 = sphi 0, %s212
      %s229 = sphi 0, %s213
      %s233 = sphi 0, %s233
      %s235 = sphi 0, %s233
      %s236 = sphi 0, %s235
      %s250 = sphi 0, %s236
    $region4: #{train_loss_discrete.1} parent=1 // loop_header_branch
      %16 = sbr.rel (%p14) target = $region8
    $region5: #{train_loss_discrete.1} parent=1 // loop_body
      %s18 = ssub.s32 %s13, 1
      %s19 = ssub.s32 %s13, 2
      %s20 = sadd.s32 %s13, 1
      %p21 = scmp.lt.s32.totalorder %s13, 0
      %s22 = scalar_select %p21, %s13, 0
      %p23 = scmp.gt.s32.totalorder %s22, 0
      %s24 = scalar_select %p23, %s22, 0
      %p25 = scmp.lt.s32.totalorder %s20, 0
      %s26 = scalar_select %p25, %s20, 0
      %p27 = scmp.gt.s32.totalorder %s26, 0
      %s28 = scalar_select %p27, %s26, 0
      %s29 = ssub.s32 %s24, %s28
      %p30 = scmp.eq.s32.totalorder %s29, 0
      %s32 = sadd.s32 %s31, 1
      %s33 = scalar_select %p30, %s31, %s32
      %p36 = pneg %p30
      %p37 = scmp.eq.s32.totalorder %s13, 2
      %p38 = por %p36, %p37
      %p39 = scmp.ne.s32.totalorder %s31, %s34
      %p40 = scmp.eq.s32.totalorder %s13, 0
      %p41 = por %p39, %p40
      %p42 = scmp.ne.s32.totalorder %s31, %s34
      %p43 = scmp.eq.s32.totalorder %s18, 2
      %p44 = por %p42, %p43
      %p45 = scmp.ne.s32.totalorder %s34, %s35
      %p46 = scmp.eq.s32.totalorder %s18, 0
      %p47 = por %p45, %p46
      %p48 = scmp.ne.s32.totalorder %s34, %s35
      %p49 = scmp.eq.s32.totalorder %s19, 2
      %p50 = por %p48, %p49
      %p52 = scmp.ne.s32.totalorder %s35, %s51
      %p53 = scmp.eq.s32.totalorder %s19, 0
      %p54 = por %p52, %p53
      %p55 = scmp.lt.s32.totalorder %s13, 0
      %s56 = scalar_select %p55, %s13, 0
      %p57 = scmp.gt.s32.totalorder %s56, 0
      %s58 = scalar_select %p57, %s56, 0
      %p59 = scmp.lt.s32.totalorder %s20, 0
      %s60 = scalar_select %p59, %s20, 0
      %p61 = scmp.gt.s32.totalorder %s60, 0
      %s62 = scalar_select %p61, %s60, 0
      %s63 = ssub.s32 %s58, %s62
      %p64 = scmp.eq.s32.totalorder %s63, 0
      %s66 = sadd.s32 %s65, 1
      %s67 = scalar_select %p64, %s65, %s66
      %p70 = pneg %p64
      %p71 = scmp.eq.s32.totalorder %s13, 2
      %p72 = por %p70, %p71
      %p73 = scmp.ne.s32.totalorder %s65, %s68
      %p74 = scmp.eq.s32.totalorder %s13, 0
      %p75 = por %p73, %p74
      %p76 = scmp.ne.s32.totalorder %s65, %s68
      %p77 = scmp.eq.s32.totalorder %s18, 2
      %p78 = por %p76, %p77
      %p79 = scmp.ne.s32.totalorder %s68, %s69
      %p80 = scmp.eq.s32.totalorder %s18, 0
      %p81 = por %p79, %p80
      %p82 = scmp.ne.s32.totalorder %s68, %s69
      %p83 = scmp.eq.s32.totalorder %s19, 2
      %p84 = por %p82, %p83
      %p86 = scmp.ne.s32.totalorder %s69, %s85
      %p87 = scmp.eq.s32.totalorder %s19, 0
      %p88 = por %p86, %p87
      %s89 = ssub.s32 %s13, 1
      %p90 = scmp.lt.s32.totalorder %s89, 0
      %s91 = scalar_select %p90, %s89, 0
      %p92 = scmp.gt.s32.totalorder %s91, 0
      %s93 = scalar_select %p92, %s91, 0
      %s94 = ssub.s32 %s20, 1
      %p95 = scmp.lt.s32.totalorder %s94, 0
      %s96 = scalar_select %p95, %s94, 0
      %p97 = scmp.gt.s32.totalorder %s96, 0
      %s98 = scalar_select %p97, %s96, 0
      %s99 = ssub.s32 %s93, %s98
      %p100 = scmp.eq.s32.totalorder %s99, 0
      %s102 = sadd.s32 %s101, 1
      %s103 = scalar_select %p100, %s101, %s102
      %p106 = pneg %p100
      %p107 = scmp.eq.s32.totalorder %s13, 2
      %p108 = por %p106, %p107
      %p109 = scmp.ne.s32.totalorder %s101, %s104
      %p110 = scmp.eq.s32.totalorder %s13, 0
      %p111 = por %p109, %p110
      %p112 = scmp.ne.s32.totalorder %s101, %s104
      %p113 = scmp.eq.s32.totalorder %s18, 2
      %p114 = por %p112, %p113
      %p115 = scmp.ne.s32.totalorder %s104, %s105
      %p116 = scmp.eq.s32.totalorder %s18, 0
      %p117 = por %p115, %p116
      %p118 = scmp.ne.s32.totalorder %s104, %s105
      %p119 = scmp.eq.s32.totalorder %s19, 2
      %p120 = por %p118, %p119
      %p122 = scmp.ne.s32.totalorder %s105, %s121
      %p123 = scmp.eq.s32.totalorder %s19, 0
      %p124 = por %p122, %p123
      %s125 = ssub.s32 %s13, 1
      %p126 = scmp.lt.s32.totalorder %s125, 0
      %s127 = scalar_select %p126, %s125, 0
      %p128 = scmp.gt.s32.totalorder %s127, 0
      %s129 = scalar_select %p128, %s127, 0
      %s130 = ssub.s32 %s20, 1
      %p131 = scmp.lt.s32.totalorder %s130, 0
      %s132 = scalar_select %p131, %s130, 0
      %p133 = scmp.gt.s32.totalorder %s132, 0
      %s134 = scalar_select %p133, %s132, 0
      %s135 = ssub.s32 %s129, %s134
      %p136 = scmp.eq.s32.totalorder %s135, 0
      %s138 = sadd.s32 %s137, 1
      %s139 = scalar_select %p136, %s137, %s138
      %p142 = pneg %p136
      %p143 = scmp.eq.s32.totalorder %s13, 2
      %p144 = por %p142, %p143
      %p145 = scmp.ne.s32.totalorder %s137, %s140
      %p146 = scmp.eq.s32.totalorder %s13, 0
      %p147 = por %p145, %p146
      %p148 = scmp.ne.s32.totalorder %s137, %s140
      %p149 = scmp.eq.s32.totalorder %s18, 2
      %p150 = por %p148, %p149
      %p151 = scmp.ne.s32.totalorder %s140, %s141
      %p152 = scmp.eq.s32.totalorder %s18, 0
      %p153 = por %p151, %p152
      %p154 = scmp.ne.s32.totalorder %s140, %s141
      %p155 = scmp.eq.s32.totalorder %s19, 2
      %p156 = por %p154, %p155
      %p158 = scmp.ne.s32.totalorder %s141, %s157
      %p159 = scmp.eq.s32.totalorder %s19, 0
      %p160 = por %p158, %p159
      %s161 = ssub.s32 %s13, 2
      %p162 = scmp.lt.s32.totalorder %s161, 0
      %s163 = scalar_select %p162, %s161, 0
      %p164 = scmp.gt.s32.totalorder %s163, 0
      %s165 = scalar_select %p164, %s163, 0
      %s166 = ssub.s32 %s20, 2
      %p167 = scmp.lt.s32.totalorder %s166, 0
      %s168 = scalar_select %p167, %s166, 0
      %p169 = scmp.gt.s32.totalorder %s168, 0
      %s170 = scalar_select %p169, %s168, 0
      %s171 = ssub.s32 %s165, %s170
      %p172 = scmp.eq.s32.totalorder %s171, 0
      %s174 = sadd.s32 %s173, 1
      %s175 = scalar_select %p172, %s173, %s174
      %p178 = pneg %p172
      %p179 = scmp.eq.s32.totalorder %s13, 2
      %p180 = por %p178, %p179
      %p181 = scmp.ne.s32.totalorder %s173, %s176
      %p182 = scmp.eq.s32.totalorder %s13, 0
      %p183 = por %p181, %p182
      %p184 = scmp.ne.s32.totalorder %s173, %s176
      %p185 = scmp.eq.s32.totalorder %s18, 2
      %p186 = por %p184, %p185
      %p187 = scmp.ne.s32.totalorder %s176, %s177
      %p188 = scmp.eq.s32.totalorder %s18, 0
      %p189 = por %p187, %p188
      %p190 = scmp.ne.s32.totalorder %s176, %s177
      %p191 = scmp.eq.s32.totalorder %s19, 2
      %p192 = por %p190, %p191
      %p194 = scmp.ne.s32.totalorder %s177, %s193
      %p195 = scmp.eq.s32.totalorder %s19, 0
      %p196 = por %p194, %p195
      %s197 = ssub.s32 %s13, 2
      %p198 = scmp.lt.s32.totalorder %s197, 0
      %s199 = scalar_select %p198, %s197, 0
      %p200 = scmp.gt.s32.totalorder %s199, 0
      %s201 = scalar_select %p200, %s199, 0
      %s202 = ssub.s32 %s20, 2
      %p203 = scmp.lt.s32.totalorder %s202, 0
      %s204 = scalar_select %p203, %s202, 0
      %p205 = scmp.gt.s32.totalorder %s204, 0
      %s206 = scalar_select %p205, %s204, 0
      %s207 = ssub.s32 %s201, %s206
      %p208 = scmp.eq.s32.totalorder %s207, 0
      %s210 = sadd.s32 %s209, 1
      %s211 = scalar_select %p208, %s209, %s210
      %p214 = pneg %p208
      %p215 = scmp.eq.s32.totalorder %s13, 2
      %p216 = por %p214, %p215
      %p217 = scmp.ne.s32.totalorder %s209, %s212
      %p218 = scmp.eq.s32.totalorder %s13, 0
      %p219 = por %p217, %p218
      %p220 = scmp.ne.s32.totalorder %s209, %s212
      %p221 = scmp.eq.s32.totalorder %s18, 2
      %p222 = por %p220, %p221
      %p223 = scmp.ne.s32.totalorder %s212, %s213
      %p224 = scmp.eq.s32.totalorder %s18, 0
      %p225 = por %p223, %p224
      %p226 = scmp.ne.s32.totalorder %s212, %s213
      %p227 = scmp.eq.s32.totalorder %s19, 2
      %p228 = por %p226, %p227
      %p230 = scmp.ne.s32.totalorder %s213, %s229
      %p231 = scmp.eq.s32.totalorder %s19, 0
      %p232 = por %p230, %p231
      %s234 = sadd.s32 %s233, 1
      %p237 = scmp.eq.s32.totalorder %s13, 2
      %p238 = scmp.ne.s32.totalorder %s233, %s235
      %p239 = scmp.eq.s32.totalorder %s13, 0
      %p240 = por %p238, %p239
      %p241 = scmp.ne.s32.totalorder %s233, %s235
      %p242 = scmp.eq.s32.totalorder %s18, 2
      %p243 = por %p241, %p242
      %p244 = scmp.ne.s32.totalorder %s235, %s236
      %p245 = scmp.eq.s32.totalorder %s18, 0
      %p246 = por %p244, %p245
      %p247 = scmp.ne.s32.totalorder %s235, %s236
      %p248 = scmp.eq.s32.totalorder %s19, 2
      %p249 = por %p247, %p248
      %p251 = scmp.ne.s32.totalorder %s236, %s250
      %p252 = scmp.eq.s32.totalorder %s19, 0
      %p253 = por %p251, %p252
      %p254 = scmp.le.s32.totalorder 1, %s13
      %p255 = scmp.lt.s32.totalorder %s13, 4
      %p256 = pnand %p254, %p255
      %p257 = pneg %p256
      // Predicated region
      $region9: #{train_loss_discrete.1} parent=5 // pred_check
        _
      $region10: #{train_loss_discrete.1} parent=5 // pred_check_branch
        %259 = sbr.rel (%p256) target = $region12
      $region11: #{train_loss_discrete.1} parent=5 // pred_region
        %s260 = ssub.s32 %s13, 1
      $region12: #{train_loss_discrete.1} parent=5 // pred_fallthru
        _
      %p261 = scmp.lt.s32.totalorder %s13, 3
      // Predicated region
      $region13: #{train_loss_discrete.1} parent=5 // pred_check
        %p262 = pneg %p261
      $region14: #{train_loss_discrete.1} parent=5 // pred_check_branch
        %264 = sbr.rel (%p262) target = $region16
      $region15: #{train_loss_discrete.1} parent=5 // pred_region
        // Predicated region
        $region17: #{train_loss_discrete.1} parent=15 // pred_check
          %p265 = pneg %p41
        $region18: #{train_loss_discrete.1} parent=15 // pred_check_branch
          %267 = sbr.rel (%p265) target = $region20
        $region19: #{train_loss_discrete.1} parent=15 // pred_region
          %p268 = scmp.lt.s32.totalorder %s13, 0
          %s269 = scalar_select %p268, %s13, 0
          %p270 = scmp.gt.s32.totalorder %s269, 0
          %s271 = scalar_select %p270, %s269, 0
          %s272 = smul.u32 4, %s271
          %s273 = ssub.s32 1, %s272
          %s274 = smul.u32 8, %s273
          %p275 = scmp.lt.s32.totalorder %s272, 0
          %s276 = scalar_select %p275, %s272, 0
          %s277 = smul.addr %s276, 8
          %s278 = scalar_lea.vmem %s0, %s277
          %p279 = scmp.lt.s32.totalorder %s13, 0
          %s280 = scalar_select %p279, %s13, 0
          %p281 = scmp.gt.s32.totalorder %s280, 0
          %s282 = scalar_select %p281, %s280, 0
          %s283 = smul.u32 4, %s282
          %s284 = ssub.s32 1, %s283
          %s285 = smul.u32 8, %s284
        $region20: #{train_loss_discrete.1} parent=15 // pred_fallthru
          _
        // Predicated region
        $region21: #{train_loss_discrete.1} parent=15 // pred_check
          %p286 = pneg %p75
        $region22: #{train_loss_discrete.1} parent=15 // pred_check_branch
          %288 = sbr.rel (%p286) target = $region24
        $region23: #{train_loss_discrete.1} parent=15 // pred_region
          %p289 = scmp.lt.s32.totalorder %s13, 0
          %s290 = scalar_select %p289, %s13, 0
          %p291 = scmp.gt.s32.totalorder %s290, 0
          %s292 = scalar_select %p291, %s290, 0
          %s293 = smul.u32 4, %s292
          %s294 = ssub.s32 1, %s293
          %p295 = scmp.lt.s32.totalorder %s293, 0
          %s296 = scalar_select %p295, %s293, 0
          %s297 = scalar_lea.vmem %s1, %s296
          %p298 = scmp.lt.s32.totalorder %s13, 0
          %s299 = scalar_select %p298, %s13, 0
          %p300 = scmp.gt.s32.totalorder %s299, 0
          %s301 = scalar_select %p300, %s299, 0
          %s302 = smul.u32 4, %s301
          %s303 = ssub.s32 1, %s302
        $region24: #{train_loss_discrete.1} parent=15 // pred_fallthru
          _
        // Predicated region
        $region25: #{train_loss_discrete.1} parent=15 // pred_check
          %p304 = pneg %p111
        $region26: #{train_loss_discrete.1} parent=15 // pred_check_branch
          %306 = sbr.rel (%p304) target = $region28
        $region27: #{train_loss_discrete.1} parent=15 // pred_region
          %s307 = ssub.s32 %s13, 1
          %p308 = scmp.lt.s32.totalorder %s307, 0
          %s309 = scalar_select %p308, %s307, 0
          %p310 = scmp.gt.s32.totalorder %s309, 0
          %s311 = scalar_select %p310, %s309, 0
          %s312 = smul.u32 12, %s311
          %s313 = ssub.s32 9, %s312
          %s314 = smul.u32 8, %s313
          %p315 = scmp.lt.s32.totalorder %s312, 8
          %s316 = scalar_select %p315, %s312, 8
          %s317 = smul.addr %s316, 8
          %s318 = scalar_lea.vmem %s2, %s317
          %s319 = ssub.s32 %s13, 1
          %p320 = scmp.lt.s32.totalorder %s319, 0
          %s321 = scalar_select %p320, %s319, 0
          %p322 = scmp.gt.s32.totalorder %s321, 0
          %s323 = scalar_select %p322, %s321, 0
          %s324 = smul.u32 12, %s323
          %s325 = ssub.s32 9, %s324
          %s326 = smul.u32 8, %s325
        $region28: #{train_loss_discrete.1} parent=15 // pred_fallthru
          _
        // Predicated region
        $region29: #{train_loss_discrete.1} parent=15 // pred_check
          %p327 = pneg %p147
        $region30: #{train_loss_discrete.1} parent=15 // pred_check_branch
          %329 = sbr.rel (%p327) target = $region32
        $region31: #{train_loss_discrete.1} parent=15 // pred_region
          %s330 = ssub.s32 %s13, 1
          %p331 = scmp.lt.s32.totalorder %s330, 0
          %s332 = scalar_select %p331, %s330, 0
          %p333 = scmp.gt.s32.totalorder %s332, 0
          %s334 = scalar_select %p333, %s332, 0
          %s335 = smul.u32 12, %s334
          %s336 = ssub.s32 9, %s335
          %p337 = scmp.lt.s32.totalorder %s335, 8
          %s338 = scalar_select %p337, %s335, 8
          %s339 = scalar_lea.vmem %s3, %s338
          %s340 = ssub.s32 %s13, 1
          %p341 = scmp.lt.s32.totalorder %s340, 0
          %s342 = scalar_select %p341, %s340, 0
          %p343 = scmp.gt.s32.totalorder %s342, 0
          %s344 = scalar_select %p343, %s342, 0
          %s345 = smul.u32 12, %s344
          %s346 = ssub.s32 9, %s345
        $region32: #{train_loss_discrete.1} parent=15 // pred_fallthru
          _
        // Predicated region
        $region33: #{train_loss_discrete.1} parent=15 // pred_check
          %p347 = pneg %p183
        $region34: #{train_loss_discrete.1} parent=15 // pred_check_branch
          %349 = sbr.rel (%p347) target = $region36
        $region35: #{train_loss_discrete.1} parent=15 // pred_region
          %s350 = ssub.s32 %s13, 2
          %p351 = scmp.lt.s32.totalorder %s350, 0
          %s352 = scalar_select %p351, %s350, 0
          %p353 = scmp.gt.s32.totalorder %s352, 0
          %s354 = scalar_select %p353, %s352, 0
          %s355 = smul.u32 4, %s354
          %s356 = ssub.s32 1, %s355
          %s357 = smul.u32 4, %s356
          %p358 = scmp.lt.s32.totalorder %s355, 0
          %s359 = scalar_select %p358, %s355, 0
          %s360 = smul.addr %s359, 4
          %s361 = scalar_lea.vmem %s4, %s360
          %s362 = ssub.s32 %s13, 2
          %p363 = scmp.lt.s32.totalorder %s362, 0
          %s364 = scalar_select %p363, %s362, 0
          %p365 = scmp.gt.s32.totalorder %s364, 0
          %s366 = scalar_select %p365, %s364, 0
          %s367 = smul.u32 4, %s366
          %s368 = ssub.s32 1, %s367
          %s369 = smul.u32 4, %s368
        $region36: #{train_loss_discrete.1} parent=15 // pred_fallthru
          _
        // Predicated region
        $region37: #{train_loss_discrete.1} parent=15 // pred_check
          %p370 = pneg %p219
        $region38: #{train_loss_discrete.1} parent=15 // pred_check_branch
          %372 = sbr.rel (%p370) target = $region40
        $region39: #{train_loss_discrete.1} parent=15 // pred_region
          %s373 = ssub.s32 %s13, 2
          %p374 = scmp.lt.s32.totalorder %s373, 0
          %s375 = scalar_select %p374, %s373, 0
          %p376 = scmp.gt.s32.totalorder %s375, 0
          %s377 = scalar_select %p376, %s375, 0
          %s378 = smul.u32 4, %s377
          %s379 = ssub.s32 1, %s378
          %p380 = scmp.lt.s32.totalorder %s378, 0
          %s381 = scalar_select %p380, %s378, 0
          %s382 = scalar_lea.vmem %s5, %s381
          %s383 = ssub.s32 %s13, 2
          %p384 = scmp.lt.s32.totalorder %s383, 0
          %s385 = scalar_select %p384, %s383, 0
          %p386 = scmp.gt.s32.totalorder %s385, 0
          %s387 = scalar_select %p386, %s385, 0
          %s388 = smul.u32 4, %s387
          %s389 = ssub.s32 1, %s388
        $region40: #{train_loss_discrete.1} parent=15 // pred_fallthru
          _
      $region16: #{train_loss_discrete.1} parent=5 // pred_fallthru
        _
      %p390 = scmp.le.s32.totalorder 1, %s13
      %p391 = scmp.lt.s32.totalorder %s13, 4
      %p392 = pnand %p390, %p391
      %p393 = pneg %p392
      // Predicated region
      $region41: #{train_loss_discrete.1} parent=5 // pred_check
        _
      $region42: #{train_loss_discrete.1} parent=5 // pred_check_branch
        %395 = sbr.rel (%p392) target = $region44
      $region43: #{train_loss_discrete.1} parent=5 // pred_region
        %s396 = ssub.s32 %s13, 1
        %p397 = scmp.lt.s32.totalorder %s18, 0
        %s398 = scalar_select %p397, %s18, 0
        %p399 = scmp.gt.s32.totalorder %s398, 0
        %s400 = scalar_select %p399, %s398, 0
        %s401 = smul.u32 4, %s400
        %s402 = ssub.s32 1, %s401
        %s403 = smul.u32 8, %s402
        %p404 = scmp.lt.s32.totalorder %s401, 0
        %s405 = scalar_select %p404, %s401, 0
        %s406 = smul.addr %s405, 8
        %s407 = scalar_lea.vmem %s0, %s406
        %p408 = pneg %p47
        %p409 = pneg %p44
        %p410 = scmp.lt.s32.totalorder %s18, 0
        %s411 = scalar_select %p410, %s18, 0
        %p412 = scmp.gt.s32.totalorder %s411, 0
        %s413 = scalar_select %p412, %s411, 0
        %s414 = smul.u32 4, %s413
        %s415 = ssub.s32 1, %s414
        %p416 = scmp.lt.s32.totalorder %s414, 0
        %s417 = scalar_select %p416, %s414, 0
        %s418 = scalar_lea.vmem %s1, %s417
        %p419 = pneg %p81
        %p420 = pneg %p78
        %s421 = ssub.s32 %s18, 1
        %p422 = scmp.lt.s32.totalorder %s421, 0
        %s423 = scalar_select %p422, %s421, 0
        %p424 = scmp.gt.s32.totalorder %s423, 0
        %s425 = scalar_select %p424, %s423, 0
        %s426 = smul.u32 12, %s425
        %s427 = ssub.s32 9, %s426
        %s428 = smul.u32 8, %s427
        %p429 = scmp.lt.s32.totalorder %s426, 8
        %s430 = scalar_select %p429, %s426, 8
        %s431 = smul.addr %s430, 8
        %s432 = scalar_lea.vmem %s2, %s431
        %p433 = pneg %p117
        %p434 = pneg %p114
        %s435 = ssub.s32 %s18, 1
        %p436 = scmp.lt.s32.totalorder %s435, 0
        %s437 = scalar_select %p436, %s435, 0
        %p438 = scmp.gt.s32.totalorder %s437, 0
        %s439 = scalar_select %p438, %s437, 0
        %s440 = smul.u32 12, %s439
        %s441 = ssub.s32 9, %s440
        %p442 = scmp.lt.s32.totalorder %s440, 8
        %s443 = scalar_select %p442, %s440, 8
        %s444 = scalar_lea.vmem %s3, %s443
        %p445 = pneg %p153
        %p446 = pneg %p150
        %s447 = ssub.s32 %s18, 2
        %p448 = scmp.lt.s32.totalorder %s447, 0
        %s449 = scalar_select %p448, %s447, 0
        %p450 = scmp.gt.s32.totalorder %s449, 0
        %s451 = scalar_select %p450, %s449, 0
        %s452 = smul.u32 4, %s451
        %s453 = ssub.s32 1, %s452
        %s454 = smul.u32 4, %s453
        %p455 = scmp.lt.s32.totalorder %s452, 0
        %s456 = scalar_select %p455, %s452, 0
        %s457 = smul.addr %s456, 4
        %s458 = scalar_lea.vmem %s4, %s457
        %p459 = pneg %p189
        %p460 = pneg %p186
        %s461 = ssub.s32 %s18, 2
        %p462 = scmp.lt.s32.totalorder %s461, 0
        %s463 = scalar_select %p462, %s461, 0
        %p464 = scmp.gt.s32.totalorder %s463, 0
        %s465 = scalar_select %p464, %s463, 0
        %s466 = smul.u32 4, %s465
        %s467 = ssub.s32 1, %s466
        %p468 = scmp.lt.s32.totalorder %s466, 0
        %s469 = scalar_select %p468, %s466, 0
        %s470 = scalar_lea.vmem %s5, %s469
        %p471 = pneg %p225
        %p472 = pneg %p222
        %p473 = pneg %p246
        %p474 = pneg %p243
        %p475 = scmp.lt.s32.totalorder %s18, 0
        %s476 = scalar_select %p475, %s18, 0
        %p477 = scmp.gt.s32.totalorder %s476, 0
        %s478 = scalar_select %p477, %s476, 0
        %s479 = smul.u32 4, %s478
        %s480 = ssub.s32 1, %s479
        %s481 = smul.u32 8, %s480
        %p482 = scmp.lt.s32.totalorder %s479, 0
        %s483 = scalar_select %p482, %s479, 0
        %s484 = smul.addr %s483, 8
        %s485 = scalar_lea.vmem %s0, %s484
        %p486 = scmp.lt.s32.totalorder %s18, 0
        %s487 = scalar_select %p486, %s18, 0
        %p488 = scmp.gt.s32.totalorder %s487, 0
        %s489 = scalar_select %p488, %s487, 0
        %s490 = smul.u32 4, %s489
        %s491 = ssub.s32 1, %s490
        %s492 = smul.u32 8, %s491
        %p493 = scmp.lt.s32.totalorder %s18, 0
        %s494 = scalar_select %p493, %s18, 0
        %p495 = scmp.gt.s32.totalorder %s494, 0
        %s496 = scalar_select %p495, %s494, 0
        %s497 = smul.u32 4, %s496
        %s498 = ssub.s32 1, %s497
        %p499 = scmp.lt.s32.totalorder %s497, 0
        %s500 = scalar_select %p499, %s497, 0
        %s501 = scalar_lea.vmem %s1, %s500
        %p502 = scmp.lt.s32.totalorder %s18, 0
        %s503 = scalar_select %p502, %s18, 0
        %p504 = scmp.gt.s32.totalorder %s503, 0
        %s505 = scalar_select %p504, %s503, 0
        %s506 = smul.u32 4, %s505
        %s507 = ssub.s32 1, %s506
        %s508 = ssub.s32 %s18, 1
        %p509 = scmp.lt.s32.totalorder %s508, 0
        %s510 = scalar_select %p509, %s508, 0
        %p511 = scmp.gt.s32.totalorder %s510, 0
        %s512 = scalar_select %p511, %s510, 0
        %s513 = smul.u32 12, %s512
        %s514 = ssub.s32 9, %s513
        %s515 = smul.u32 8, %s514
        %p516 = scmp.lt.s32.totalorder %s513, 8
        %s517 = scalar_select %p516, %s513, 8
        %s518 = smul.addr %s517, 8
        %s519 = scalar_lea.vmem %s2, %s518
        %s520 = ssub.s32 %s18, 1
        %p521 = scmp.lt.s32.totalorder %s520, 0
        %s522 = scalar_select %p521, %s520, 0
        %p523 = scmp.gt.s32.totalorder %s522, 0
        %s524 = scalar_select %p523, %s522, 0
        %s525 = smul.u32 12, %s524
        %s526 = ssub.s32 9, %s525
        %s527 = smul.u32 8, %s526
        %s528 = ssub.s32 %s18, 1
        %p529 = scmp.lt.s32.totalorder %s528, 0
        %s530 = scalar_select %p529, %s528, 0
        %p531 = scmp.gt.s32.totalorder %s530, 0
        %s532 = scalar_select %p531, %s530, 0
        %s533 = smul.u32 12, %s532
        %s534 = ssub.s32 9, %s533
        %p535 = scmp.lt.s32.totalorder %s533, 8
        %s536 = scalar_select %p535, %s533, 8
        %s537 = scalar_lea.vmem %s3, %s536
        %s538 = ssub.s32 %s18, 1
        %p539 = scmp.lt.s32.totalorder %s538, 0
        %s540 = scalar_select %p539, %s538, 0
        %p541 = scmp.gt.s32.totalorder %s540, 0
        %s542 = scalar_select %p541, %s540, 0
        %s543 = smul.u32 12, %s542
        %s544 = ssub.s32 9, %s543
        %s545 = ssub.s32 %s18, 2
        %p546 = scmp.lt.s32.totalorder %s545, 0
        %s547 = scalar_select %p546, %s545, 0
        %p548 = scmp.gt.s32.totalorder %s547, 0
        %s549 = scalar_select %p548, %s547, 0
        %s550 = smul.u32 4, %s549
        %s551 = ssub.s32 1, %s550
        %s552 = smul.u32 4, %s551
        %p553 = scmp.lt.s32.totalorder %s550, 0
        %s554 = scalar_select %p553, %s550, 0
        %s555 = smul.addr %s554, 4
        %s556 = scalar_lea.vmem %s4, %s555
        %s557 = ssub.s32 %s18, 2
        %p558 = scmp.lt.s32.totalorder %s557, 0
        %s559 = scalar_select %p558, %s557, 0
        %p560 = scmp.gt.s32.totalorder %s559, 0
        %s561 = scalar_select %p560, %s559, 0
        %s562 = smul.u32 4, %s561
        %s563 = ssub.s32 1, %s562
        %s564 = smul.u32 4, %s563
        %s565 = ssub.s32 %s18, 2
        %p566 = scmp.lt.s32.totalorder %s565, 0
        %s567 = scalar_select %p566, %s565, 0
        %p568 = scmp.gt.s32.totalorder %s567, 0
        %s569 = scalar_select %p568, %s567, 0
        %s570 = smul.u32 4, %s569
        %s571 = ssub.s32 1, %s570
        %p572 = scmp.lt.s32.totalorder %s570, 0
        %s573 = scalar_select %p572, %s570, 0
        %s574 = scalar_lea.vmem %s5, %s573
        %s575 = ssub.s32 %s18, 2
        %p576 = scmp.lt.s32.totalorder %s575, 0
        %s577 = scalar_select %p576, %s575, 0
        %p578 = scmp.gt.s32.totalorder %s577, 0
        %s579 = scalar_select %p578, %s577, 0
        %s580 = smul.u32 4, %s579
        %s581 = ssub.s32 1, %s580
        %p582 = scmp.eq.s32.totalorder %s18, 0
        // Predicated region
        $region45: #{train_loss_discrete.1} parent=43 // pred_check
          %p583 = pneg %p582
        $region46: #{train_loss_discrete.1} parent=43 // pred_check_branch
          %585 = sbr.rel (%p583) target = $region48
        $region47: #{train_loss_discrete.1} parent=43 // pred_region
          %v586 = vlaneseq
          %vm587 = vcmp.ge.s32.totalorder %v586, 0
          %vm588 = vcmp.lt.s32.totalorder %v586, 512
          %vm589 = vmand %vm587, %vm588
          %590 = vst.msk [vmem:[#allocation2] sm:$0xf] %vm589, 0.0
          %591 = vst.msk [vmem:[#allocation3] sm:$0xf] %vm589, 0.0
          %592 = vst.msk [vmem:[#allocation4] sm:$0xf] %vm589, 0.0
          %593 = vst.msk [vmem:[#allocation5] sm:$0xf] %vm589, 0.0
          %594 = vst.msk [vmem:[#allocation6] sm:$0xf] %vm589, 0.0
          %595 = vst.msk [vmem:[#allocation7] sm:$0xf] %vm589, 0.0
        $region48: #{train_loss_discrete.1} parent=43 // pred_fallthru
          _
        %p596 = scmp.lt.s32.totalorder %s18, 1
        // Predicated region
        $region49: #{train_loss_discrete.1} parent=43 // pred_check
          %p597 = pneg %p596
        $region50: #{train_loss_discrete.1} parent=43 // pred_check_branch
          %599 = sbr.rel (%p597) target = $region52
        $region51: #{train_loss_discrete.1} parent=43 // pred_region
          %s600 = smul.u32 %s18, 512
          %v601 = vlaneseq
          %v602 = vand.u32 %v601, 127
          %v603 = vadd.s32 %v602, 128
          %v604 = vadd.s32 %v602, 256
          %v605 = vadd.s32 %v602, 384
          %v606 = vlaneseq
          %v607 = vshrl.u32 %v606, 7
          %v608 = vld [vmem:[%s485] sm:$0x1f]
          %v609 = vld [vmem:[%s485 + $0x8] sm:$0x1f]
          %v610 = vld [vmem:[%s485 + $0x10] sm:$0x1f]
          %v611 = vld [vmem:[%s485 + $0x18] sm:$0x1f]
          %v612 = vld [vmem:[%s501] sm:$0xf]
          %s613 = sadd.s32 %s600, 0
          %v614 = vstv %s613
          %v615 = vadd.s32 %v614, %v602
          %v616 = vadd.s32 %v614, %v603
          %v617 = vadd.s32 %v614, %v604
          %v618 = vadd.s32 %v614, %v605
          %vm619 = vcmp.lt.s32.totalorder %v615, 48
          %vm620 = vcmp.lt.s32.totalorder %v616, 48
          %vm621 = vcmp.lt.s32.totalorder %v617, 48
          %vm622 = vcmp.lt.s32.totalorder %v618, 48
          %vm623 = vcmp.ge.s32.totalorder %v612, 0
          %v624 = vsel %vm623, 1, 0
          %v625 = vperm.slane %v624, 0
          %v626 = vperm.slane %v624, 1
          %v627 = vperm.slane %v624, 2
          %v628 = vperm.slane %v624, 3
          %vm629 = vcmp.ne.s32.totalorder %v625, 0
          %vm630 = vcmp.ne.s32.totalorder %v626, 0
          %vm631 = vcmp.ne.s32.totalorder %v627, 0
          %vm632 = vcmp.ne.s32.totalorder %v628, 0
          %vm633 = vmand %vm619, %vm629
          %vm634 = vmand %vm620, %vm630
          %vm635 = vmand %vm621, %vm631
          %vm636 = vmand %vm622, %vm632
          %vm637 = vcmask 1044480
          %v638 = vsel %vm637, %v608, -inf
          %v639 = vrot.slane %v638, 4
          %v640 = vmax.f32 %v638, %v639
          %v641 = vrot.slane %v640, 2
          %v642 = vmax.f32 %v640, %v641
          %v643 = vrot.slane %v642, 1
          %v644 = vmax.f32 %v642, %v643
          %v645 = vsel %vm637, %v609, -inf
          %v646 = vrot.slane %v645, 4
          %v647 = vmax.f32 %v645, %v646
          %v648 = vrot.slane %v647, 2
          %v649 = vmax.f32 %v647, %v648
          %v650 = vrot.slane %v649, 1
          %v651 = vmax.f32 %v649, %v650
          %v652 = vsel %vm637, %v610, -inf
          %v653 = vrot.slane %v652, 4
          %v654 = vmax.f32 %v652, %v653
          %v655 = vrot.slane %v654, 2
          %v656 = vmax.f32 %v654, %v655
          %v657 = vrot.slane %v656, 1
          %v658 = vmax.f32 %v656, %v657
          %v659 = vsel %vm637, %v611, -inf
          %v660 = vrot.slane %v659, 4
          %v661 = vmax.f32 %v659, %v660
          %v662 = vrot.slane %v661, 2
          %v663 = vmax.f32 %v661, %v662
          %v664 = vrot.slane %v663, 1
          %v665 = vmax.f32 %v663, %v664
          %v666 = vsub.f32 %v608, %v644
          %v667 = vsub.f32 %v609, %v651
          %v668 = vsub.f32 %v610, %v658
          %v669 = vsub.f32 %v611, %v665
          %v670 = vmul.f32 %v666, 1.442695
          %v671 = vpow.pop %v670
          %v672 = vmul.f32 %v667, 1.442695
          %v673 = vpow.pop %v672
          %v674 = vmul.f32 %v668, 1.442695
          %v675 = vpow.pop %v674
          %v676 = vmul.f32 %v669, 1.442695
          %v677 = vpow.pop %v676
          %v678 = vsel %vm637, %v671, 0.0
          %v679 = vrot.slane %v678, 4
          %v680 = vadd.f32 %v678, %v679
          %v681 = vrot.slane %v680, 2
          %v682 = vadd.f32 %v680, %v681
          %v683 = vrot.slane %v682, 1
          %v684 = vadd.f32 %v682, %v683
          %v685 = vsel %vm637, %v673, 0.0
          %v686 = vrot.slane %v685, 4
          %v687 = vadd.f32 %v685, %v686
          %v688 = vrot.slane %v687, 2
          %v689 = vadd.f32 %v687, %v688
          %v690 = vrot.slane %v689, 1
          %v691 = vadd.f32 %v689, %v690
          %v692 = vsel %vm637, %v675, 0.0
          %v693 = vrot.slane %v692, 4
          %v694 = vadd.f32 %v692, %v693
          %v695 = vrot.slane %v694, 2
          %v696 = vadd.f32 %v694, %v695
          %v697 = vrot.slane %v696, 1
          %v698 = vadd.f32 %v696, %v697
          %v699 = vsel %vm637, %v677, 0.0
          %v700 = vrot.slane %v699, 4
          %v701 = vadd.f32 %v699, %v700
          %v702 = vrot.slane %v701, 2
          %v703 = vadd.f32 %v701, %v702
          %v704 = vrot.slane %v703, 1
          %v705 = vadd.f32 %v703, %v704
          %v706 = vlog2.pop %v684
          %v707 = vmul.f32 %v706, 0.6931472
          %v708 = vlog2.pop %v691
          %v709 = vmul.f32 %v708, 0.6931472
          %v710 = vlog2.pop %v698
          %v711 = vmul.f32 %v710, 0.6931472
          %v712 = vlog2.pop %v705
          %v713 = vmul.f32 %v712, 0.6931472
          %v714 = vadd.f32 %v644, %v707
          %v715 = vadd.f32 %v651, %v709
          %v716 = vadd.f32 %v658, %v711
          %v717 = vadd.f32 %v665, %v713
          %v718 = vperm.slane %v612, 0
          %v719 = vperm.slane %v612, 1
          %v720 = vperm.slane %v612, 2
          %v721 = vperm.slane %v612, 3
          %vm722 = vcmp.eq.s32.totalorder %v607, %v718
          %vm723 = vcmp.eq.s32.totalorder %v607, %v719
          %vm724 = vcmp.eq.s32.totalorder %v607, %v720
          %vm725 = vcmp.eq.s32.totalorder %v607, %v721
          %v726 = vsel %vm722, %v608, 0.0
          %v727 = vsel %vm723, %v609, 0.0
          %v728 = vsel %vm724, %v610, 0.0
          %v729 = vsel %vm725, %v611, 0.0
          %v730 = vsel %vm637, %v726, 0.0
          %v731 = vrot.slane %v730, 4
          %v732 = vadd.f32 %v730, %v731
          %v733 = vrot.slane %v732, 2
          %v734 = vadd.f32 %v732, %v733
          %v735 = vrot.slane %v734, 1
          %v736 = vadd.f32 %v734, %v735
          %v737 = vsel %vm637, %v727, 0.0
          %v738 = vrot.slane %v737, 4
          %v739 = vadd.f32 %v737, %v738
          %v740 = vrot.slane %v739, 2
          %v741 = vadd.f32 %v739, %v740
          %v742 = vrot.slane %v741, 1
          %v743 = vadd.f32 %v741, %v742
          %v744 = vsel %vm637, %v728, 0.0
          %v745 = vrot.slane %v744, 4
          %v746 = vadd.f32 %v744, %v745
          %v747 = vrot.slane %v746, 2
          %v748 = vadd.f32 %v746, %v747
          %v749 = vrot.slane %v748, 1
          %v750 = vadd.f32 %v748, %v749
          %v751 = vsel %vm637, %v729, 0.0
          %v752 = vrot.slane %v751, 4
          %v753 = vadd.f32 %v751, %v752
          %v754 = vrot.slane %v753, 2
          %v755 = vadd.f32 %v753, %v754
          %v756 = vrot.slane %v755, 1
          %v757 = vadd.f32 %v755, %v756
          %v758 = vsub.f32 %v714, %v736
          %v759 = vsub.f32 %v715, %v743
          %v760 = vsub.f32 %v716, %v750
          %v761 = vsub.f32 %v717, %v757
          %v762 = vsel %vm633, %v758, 0.0
          %v763 = vsel %vm634, %v759, 0.0
          %v764 = vsel %vm635, %v760, 0.0
          %v765 = vsel %vm636, %v761, 0.0
          %v766 = vadd.f32 %v762, 0.0
          %v767 = vadd.f32 %v763, 0.0
          %v768 = vadd.f32 %v764, 0.0
          %v769 = vadd.f32 %v765, 0.0
          %v770 = vsel %vm633, 1, 0
          %v771 = vsel %vm634, 1, 0
          %v772 = vsel %vm635, 1, 0
          %v773 = vsel %vm636, 1, 0
          %v774 = vcvt.s32.f32 %v770
          %v775 = vcvt.s32.f32 %v771
          %v776 = vcvt.s32.f32 %v772
          %v777 = vcvt.s32.f32 %v773
          %v778 = vadd.f32 %v774, 0.0
          %v779 = vadd.f32 %v775, 0.0
          %v780 = vadd.f32 %v776, 0.0
          %v781 = vadd.f32 %v777, 0.0
          %v782 = vld [vmem:[#allocation2] sm:$0xf]
          %v787 = vrot.slane %v767, 7
          %v788 = vrot.slane %v768, 6
          %v789 = vrot.slane %v769, 5
          %vm790 = vcmask 1040384
          %v791 = vsel %vm790, %v766, %v787
          %vm792 = vcmask 1042434
          %v793 = vsel %vm792, %v788, %v789
          %vm794 = vcmask 1041408
          %v795 = vsel %vm794, %v791, %v793
          %v797 = vadd.f32 %v782, %v795
          %v798 = vlaneseq
          %vm799 = vcmp.ge.s32.totalorder %v798, 0
          %vm800 = vcmp.lt.s32.totalorder %v798, 512
          %vm801 = vmand %vm799, %vm800
          %802 = vst.msk [vmem:[#allocation2] sm:$0xf] %vm801, %v797
          %v803 = vld [vmem:[#allocation3] sm:$0xf]
          %v808 = vrot.slane %v779, 7
          %v809 = vrot.slane %v780, 6
          %v810 = vrot.slane %v781, 5
          %v811 = vsel %vm790, %v778, %v808
          %v812 = vsel %vm792, %v809, %v810
          %v813 = vsel %vm794, %v811, %v812
          %v815 = vadd.f32 %v803, %v813
          %816 = vst.msk [vmem:[#allocation3] sm:$0xf] %vm801, %v815
        $region52: #{train_loss_discrete.1} parent=43 // pred_fallthru
          _
        %p817 = scmp.ge.s32.totalorder %s18, 1
        %p818 = scmp.lt.s32.totalorder %s18, 2
        %p819 = pnand %p817, %p818
        %p820 = pneg %p819
        // Predicated region
        $region53: #{train_loss_discrete.1} parent=43 // pred_check
          _
        $region54: #{train_loss_discrete.1} parent=43 // pred_check_branch
          %822 = sbr.rel (%p819) target = $region56
        $region55: #{train_loss_discrete.1} parent=43 // pred_region
          %s823 = ssub.s32 %s18, 1
          %s824 = smul.u32 %s823, 1536
          %v825 = vlaneseq
          %v826 = vand.u32 %v825, 127
          %v827 = vadd.s32 %v826, 128
          %v828 = vadd.s32 %v826, 256
          %v829 = vadd.s32 %v826, 384
          %v830 = vlaneseq
          %v831 = vshrl.u32 %v830, 7
          %v832 = vld [vmem:[%s519] sm:$0x1f]
          %v833 = vld [vmem:[%s519 + $0x8] sm:$0x1f]
          %v834 = vld [vmem:[%s519 + $0x10] sm:$0x1f]
          %v835 = vld [vmem:[%s519 + $0x18] sm:$0x1f]
          %v836 = vld [vmem:[%s537] sm:$0xf]
          %s837 = sadd.s32 %s824, 0
          %v838 = vstv %s837
          %v839 = vadd.s32 %v838, %v826
          %v840 = vadd.s32 %v838, %v827
          %v841 = vadd.s32 %v838, %v828
          %v842 = vadd.s32 %v838, %v829
          %vm843 = vcmp.lt.s32.totalorder %v839, 1152
          %vm844 = vcmp.lt.s32.totalorder %v840, 1152
          %vm845 = vcmp.lt.s32.totalorder %v841, 1152
          %vm846 = vcmp.lt.s32.totalorder %v842, 1152
          %vm847 = vcmp.ge.s32.totalorder %v836, 0
          %v848 = vsel %vm847, 1, 0
          %v849 = vperm.slane %v848, 0
          %v850 = vperm.slane %v848, 1
          %v851 = vperm.slane %v848, 2
          %v852 = vperm.slane %v848, 3
          %vm853 = vcmp.ne.s32.totalorder %v849, 0
          %vm854 = vcmp.ne.s32.totalorder %v850, 0
          %vm855 = vcmp.ne.s32.totalorder %v851, 0
          %vm856 = vcmp.ne.s32.totalorder %v852, 0
          %vm857 = vmand %vm843, %vm853
          %vm858 = vmand %vm844, %vm854
          %vm859 = vmand %vm845, %vm855
          %vm860 = vmand %vm846, %vm856
          %vm861 = vcmask 1044480
          %v862 = vsel %vm861, %v832, -inf
          %v863 = vrot.slane %v862, 4
          %v864 = vmax.f32 %v862, %v863
          %v865 = vrot.slane %v864, 2
          %v866 = vmax.f32 %v864, %v865
          %v867 = vrot.slane %v866, 1
          %v868 = vmax.f32 %v866, %v867
          %v869 = vsel %vm861, %v833, -inf
          %v870 = vrot.slane %v869, 4
          %v871 = vmax.f32 %v869, %v870
          %v872 = vrot.slane %v871, 2
          %v873 = vmax.f32 %v871, %v872
          %v874 = vrot.slane %v873, 1
          %v875 = vmax.f32 %v873, %v874
          %v876 = vsel %vm861, %v834, -inf
          %v877 = vrot.slane %v876, 4
          %v878 = vmax.f32 %v876, %v877
          %v879 = vrot.slane %v878, 2
          %v880 = vmax.f32 %v878, %v879
          %v881 = vrot.slane %v880, 1
          %v882 = vmax.f32 %v880, %v881
          %v883 = vsel %vm861, %v835, -inf
          %v884 = vrot.slane %v883, 4
          %v885 = vmax.f32 %v883, %v884
          %v886 = vrot.slane %v885, 2
          %v887 = vmax.f32 %v885, %v886
          %v888 = vrot.slane %v887, 1
          %v889 = vmax.f32 %v887, %v888
          %v890 = vsub.f32 %v832, %v868
          %v891 = vsub.f32 %v833, %v875
          %v892 = vsub.f32 %v834, %v882
          %v893 = vsub.f32 %v835, %v889
          %v894 = vmul.f32 %v890, 1.442695
          %v895 = vpow.pop %v894
          %v896 = vmul.f32 %v891, 1.442695
          %v897 = vpow.pop %v896
          %v898 = vmul.f32 %v892, 1.442695
          %v899 = vpow.pop %v898
          %v900 = vmul.f32 %v893, 1.442695
          %v901 = vpow.pop %v900
          %v902 = vsel %vm861, %v895, 0.0
          %v903 = vrot.slane %v902, 4
          %v904 = vadd.f32 %v902, %v903
          %v905 = vrot.slane %v904, 2
          %v906 = vadd.f32 %v904, %v905
          %v907 = vrot.slane %v906, 1
          %v908 = vadd.f32 %v906, %v907
          %v909 = vsel %vm861, %v897, 0.0
          %v910 = vrot.slane %v909, 4
          %v911 = vadd.f32 %v909, %v910
          %v912 = vrot.slane %v911, 2
          %v913 = vadd.f32 %v911, %v912
          %v914 = vrot.slane %v913, 1
          %v915 = vadd.f32 %v913, %v914
          %v916 = vsel %vm861, %v899, 0.0
          %v917 = vrot.slane %v916, 4
          %v918 = vadd.f32 %v916, %v917
          %v919 = vrot.slane %v918, 2
          %v920 = vadd.f32 %v918, %v919
          %v921 = vrot.slane %v920, 1
          %v922 = vadd.f32 %v920, %v921
          %v923 = vsel %vm861, %v901, 0.0
          %v924 = vrot.slane %v923, 4
          %v925 = vadd.f32 %v923, %v924
          %v926 = vrot.slane %v925, 2
          %v927 = vadd.f32 %v925, %v926
          %v928 = vrot.slane %v927, 1
          %v929 = vadd.f32 %v927, %v928
          %v930 = vlog2.pop %v908
          %v931 = vmul.f32 %v930, 0.6931472
          %v932 = vlog2.pop %v915
          %v933 = vmul.f32 %v932, 0.6931472
          %v934 = vlog2.pop %v922
          %v935 = vmul.f32 %v934, 0.6931472
          %v936 = vlog2.pop %v929
          %v937 = vmul.f32 %v936, 0.6931472
          %v938 = vadd.f32 %v868, %v931
          %v939 = vadd.f32 %v875, %v933
          %v940 = vadd.f32 %v882, %v935
          %v941 = vadd.f32 %v889, %v937
          %v942 = vperm.slane %v836, 0
          %v943 = vperm.slane %v836, 1
          %v944 = vperm.slane %v836, 2
          %v945 = vperm.slane %v836, 3
          %vm946 = vcmp.eq.s32.totalorder %v831, %v942
          %vm947 = vcmp.eq.s32.totalorder %v831, %v943
          %vm948 = vcmp.eq.s32.totalorder %v831, %v944
          %vm949 = vcmp.eq.s32.totalorder %v831, %v945
          %v950 = vsel %vm946, %v832, 0.0
          %v951 = vsel %vm947, %v833, 0.0
          %v952 = vsel %vm948, %v834, 0.0
          %v953 = vsel %vm949, %v835, 0.0
          %v954 = vsel %vm861, %v950, 0.0
          %v955 = vrot.slane %v954, 4
          %v956 = vadd.f32 %v954, %v955
          %v957 = vrot.slane %v956, 2
          %v958 = vadd.f32 %v956, %v957
          %v959 = vrot.slane %v958, 1
          %v960 = vadd.f32 %v958, %v959
          %v961 = vsel %vm861, %v951, 0.0
          %v962 = vrot.slane %v961, 4
          %v963 = vadd.f32 %v961, %v962
          %v964 = vrot.slane %v963, 2
          %v965 = vadd.f32 %v963, %v964
          %v966 = vrot.slane %v965, 1
          %v967 = vadd.f32 %v965, %v966
          %v968 = vsel %vm861, %v952, 0.0
          %v969 = vrot.slane %v968, 4
          %v970 = vadd.f32 %v968, %v969
          %v971 = vrot.slane %v970, 2
          %v972 = vadd.f32 %v970, %v971
          %v973 = vrot.slane %v972, 1
          %v974 = vadd.f32 %v972, %v973
          %v975 = vsel %vm861, %v953, 0.0
          %v976 = vrot.slane %v975, 4
          %v977 = vadd.f32 %v975, %v976
          %v978 = vrot.slane %v977, 2
          %v979 = vadd.f32 %v977, %v978
          %v980 = vrot.slane %v979, 1
          %v981 = vadd.f32 %v979, %v980
          %v982 = vsub.f32 %v938, %v960
          %v983 = vsub.f32 %v939, %v967
          %v984 = vsub.f32 %v940, %v974
          %v985 = vsub.f32 %v941, %v981
          %v986 = vsel %vm857, %v982, 0.0
          %v987 = vsel %vm858, %v983, 0.0
          %v988 = vsel %vm859, %v984, 0.0
          %v989 = vsel %vm860, %v985, 0.0
          %v990 = vadd.f32 %v986, 0.0
          %v991 = vadd.f32 %v987, 0.0
          %v992 = vadd.f32 %v988, 0.0
          %v993 = vadd.f32 %v989, 0.0
          %v994 = vsel %vm857, 1, 0
          %v995 = vsel %vm858, 1, 0
          %v996 = vsel %vm859, 1, 0
          %v997 = vsel %vm860, 1, 0
          %v998 = vcvt.s32.f32 %v994
          %v999 = vcvt.s32.f32 %v995
          %v1000 = vcvt.s32.f32 %v996
          %v1001 = vcvt.s32.f32 %v997
          %v1002 = vadd.f32 %v998, 0.0
          %v1003 = vadd.f32 %v999, 0.0
          %v1004 = vadd.f32 %v1000, 0.0
          %v1005 = vadd.f32 %v1001, 0.0
          %s1006 = scalar_lea.vmem %s519, 32
          %v1007 = vld [vmem:[%s1006] sm:$0x1f]
          %v1008 = vld [vmem:[%s1006 + $0x8] sm:$0x1f]
          %v1009 = vld [vmem:[%s1006 + $0x10] sm:$0x1f]
          %v1010 = vld [vmem:[%s1006 + $0x18] sm:$0x1f]
          %s1011 = scalar_lea.vmem %s537, 4
          %v1012 = vld [vmem:[%s1011] sm:$0xf]
          %s1013 = sadd.s32 %s824, 512
          %v1014 = vstv %s1013
          %v1015 = vadd.s32 %v1014, %v826
          %v1016 = vadd.s32 %v1014, %v827
          %v1017 = vadd.s32 %v1014, %v828
          %v1018 = vadd.s32 %v1014, %v829
          %vm1019 = vcmp.lt.s32.totalorder %v1015, 1152
          %vm1020 = vcmp.lt.s32.totalorder %v1016, 1152
          %vm1021 = vcmp.lt.s32.totalorder %v1017, 1152
          %vm1022 = vcmp.lt.s32.totalorder %v1018, 1152
          %vm1023 = vcmp.ge.s32.totalorder %v1012, 0
          %v1024 = vsel %vm1023, 1, 0
          %v1025 = vperm.slane %v1024, 0
          %v1026 = vperm.slane %v1024, 1
          %v1027 = vperm.slane %v1024, 2
          %v1028 = vperm.slane %v1024, 3
          %vm1029 = vcmp.ne.s32.totalorder %v1025, 0
          %vm1030 = vcmp.ne.s32.totalorder %v1026, 0
          %vm1031 = vcmp.ne.s32.totalorder %v1027, 0
          %vm1032 = vcmp.ne.s32.totalorder %v1028, 0
          %vm1033 = vmand %vm1019, %vm1029
          %vm1034 = vmand %vm1020, %vm1030
          %vm1035 = vmand %vm1021, %vm1031
          %vm1036 = vmand %vm1022, %vm1032
          %v1037 = vsel %vm861, %v1007, -inf
          %v1038 = vrot.slane %v1037, 4
          %v1039 = vmax.f32 %v1037, %v1038
          %v1040 = vrot.slane %v1039, 2
          %v1041 = vmax.f32 %v1039, %v1040
          %v1042 = vrot.slane %v1041, 1
          %v1043 = vmax.f32 %v1041, %v1042
          %v1044 = vsel %vm861, %v1008, -inf
          %v1045 = vrot.slane %v1044, 4
          %v1046 = vmax.f32 %v1044, %v1045
          %v1047 = vrot.slane %v1046, 2
          %v1048 = vmax.f32 %v1046, %v1047
          %v1049 = vrot.slane %v1048, 1
          %v1050 = vmax.f32 %v1048, %v1049
          %v1051 = vsel %vm861, %v1009, -inf
          %v1052 = vrot.slane %v1051, 4
          %v1053 = vmax.f32 %v1051, %v1052
          %v1054 = vrot.slane %v1053, 2
          %v1055 = vmax.f32 %v1053, %v1054
          %v1056 = vrot.slane %v1055, 1
          %v1057 = vmax.f32 %v1055, %v1056
          %v1058 = vsel %vm861, %v1010, -inf
          %v1059 = vrot.slane %v1058, 4
          %v1060 = vmax.f32 %v1058, %v1059
          %v1061 = vrot.slane %v1060, 2
          %v1062 = vmax.f32 %v1060, %v1061
          %v1063 = vrot.slane %v1062, 1
          %v1064 = vmax.f32 %v1062, %v1063
          %v1065 = vsub.f32 %v1007, %v1043
          %v1066 = vsub.f32 %v1008, %v1050
          %v1067 = vsub.f32 %v1009, %v1057
          %v1068 = vsub.f32 %v1010, %v1064
          %v1069 = vmul.f32 %v1065, 1.442695
          %v1070 = vpow.pop %v1069
          %v1071 = vmul.f32 %v1066, 1.442695
          %v1072 = vpow.pop %v1071
          %v1073 = vmul.f32 %v1067, 1.442695
          %v1074 = vpow.pop %v1073
          %v1075 = vmul.f32 %v1068, 1.442695
          %v1076 = vpow.pop %v1075
          %v1077 = vsel %vm861, %v1070, 0.0
          %v1078 = vrot.slane %v1077, 4
          %v1079 = vadd.f32 %v1077, %v1078
          %v1080 = vrot.slane %v1079, 2
          %v1081 = vadd.f32 %v1079, %v1080
          %v1082 = vrot.slane %v1081, 1
          %v1083 = vadd.f32 %v1081, %v1082
          %v1084 = vsel %vm861, %v1072, 0.0
          %v1085 = vrot.slane %v1084, 4
          %v1086 = vadd.f32 %v1084, %v1085
          %v1087 = vrot.slane %v1086, 2
          %v1088 = vadd.f32 %v1086, %v1087
          %v1089 = vrot.slane %v1088, 1
          %v1090 = vadd.f32 %v1088, %v1089
          %v1091 = vsel %vm861, %v1074, 0.0
          %v1092 = vrot.slane %v1091, 4
          %v1093 = vadd.f32 %v1091, %v1092
          %v1094 = vrot.slane %v1093, 2
          %v1095 = vadd.f32 %v1093, %v1094
          %v1096 = vrot.slane %v1095, 1
          %v1097 = vadd.f32 %v1095, %v1096
          %v1098 = vsel %vm861, %v1076, 0.0
          %v1099 = vrot.slane %v1098, 4
          %v1100 = vadd.f32 %v1098, %v1099
          %v1101 = vrot.slane %v1100, 2
          %v1102 = vadd.f32 %v1100, %v1101
          %v1103 = vrot.slane %v1102, 1
          %v1104 = vadd.f32 %v1102, %v1103
          %v1105 = vlog2.pop %v1083
          %v1106 = vmul.f32 %v1105, 0.6931472
          %v1107 = vlog2.pop %v1090
          %v1108 = vmul.f32 %v1107, 0.6931472
          %v1109 = vlog2.pop %v1097
          %v1110 = vmul.f32 %v1109, 0.6931472
          %v1111 = vlog2.pop %v1104
          %v1112 = vmul.f32 %v1111, 0.6931472
          %v1113 = vadd.f32 %v1043, %v1106
          %v1114 = vadd.f32 %v1050, %v1108
          %v1115 = vadd.f32 %v1057, %v1110
          %v1116 = vadd.f32 %v1064, %v1112
          %v1117 = vperm.slane %v1012, 0
          %v1118 = vperm.slane %v1012, 1
          %v1119 = vperm.slane %v1012, 2
          %v1120 = vperm.slane %v1012, 3
          %vm1121 = vcmp.eq.s32.totalorder %v831, %v1117
          %vm1122 = vcmp.eq.s32.totalorder %v831, %v1118
          %vm1123 = vcmp.eq.s32.totalorder %v831, %v1119
          %vm1124 = vcmp.eq.s32.totalorder %v831, %v1120
          %v1125 = vsel %vm1121, %v1007, 0.0
          %v1126 = vsel %vm1122, %v1008, 0.0
          %v1127 = vsel %vm1123, %v1009, 0.0
          %v1128 = vsel %vm1124, %v1010, 0.0
          %v1129 = vsel %vm861, %v1125, 0.0
          %v1130 = vrot.slane %v1129, 4
          %v1131 = vadd.f32 %v1129, %v1130
          %v1132 = vrot.slane %v1131, 2
          %v1133 = vadd.f32 %v1131, %v1132
          %v1134 = vrot.slane %v1133, 1
          %v1135 = vadd.f32 %v1133, %v1134
          %v1136 = vsel %vm861, %v1126, 0.0
          %v1137 = vrot.slane %v1136, 4
          %v1138 = vadd.f32 %v1136, %v1137
          %v1139 = vrot.slane %v1138, 2
          %v1140 = vadd.f32 %v1138, %v1139
          %v1141 = vrot.slane %v1140, 1
          %v1142 = vadd.f32 %v1140, %v1141
          %v1143 = vsel %vm861, %v1127, 0.0
          %v1144 = vrot.slane %v1143, 4
          %v1145 = vadd.f32 %v1143, %v1144
          %v1146 = vrot.slane %v1145, 2
          %v1147 = vadd.f32 %v1145, %v1146
          %v1148 = vrot.slane %v1147, 1
          %v1149 = vadd.f32 %v1147, %v1148
          %v1150 = vsel %vm861, %v1128, 0.0
          %v1151 = vrot.slane %v1150, 4
          %v1152 = vadd.f32 %v1150, %v1151
          %v1153 = vrot.slane %v1152, 2
          %v1154 = vadd.f32 %v1152, %v1153
          %v1155 = vrot.slane %v1154, 1
          %v1156 = vadd.f32 %v1154, %v1155
          %v1157 = vsub.f32 %v1113, %v1135
          %v1158 = vsub.f32 %v1114, %v1142
          %v1159 = vsub.f32 %v1115, %v1149
          %v1160 = vsub.f32 %v1116, %v1156
          %v1161 = vsel %vm1033, %v1157, 0.0
          %v1162 = vsel %vm1034, %v1158, 0.0
          %v1163 = vsel %vm1035, %v1159, 0.0
          %v1164 = vsel %vm1036, %v1160, 0.0
          %v1165 = vadd.f32 %v990, %v1161
          %v1166 = vadd.f32 %v991, %v1162
          %v1167 = vadd.f32 %v992, %v1163
          %v1168 = vadd.f32 %v993, %v1164
          %v1169 = vsel %vm1033, 1, 0
          %v1170 = vsel %vm1034, 1, 0
          %v1171 = vsel %vm1035, 1, 0
          %v1172 = vsel %vm1036, 1, 0
          %v1173 = vcvt.s32.f32 %v1169
          %v1174 = vcvt.s32.f32 %v1170
          %v1175 = vcvt.s32.f32 %v1171
          %v1176 = vcvt.s32.f32 %v1172
          %v1177 = vadd.f32 %v1002, %v1173
          %v1178 = vadd.f32 %v1003, %v1174
          %v1179 = vadd.f32 %v1004, %v1175
          %v1180 = vadd.f32 %v1005, %v1176
          %s1181 = scalar_lea.vmem %s519, 64
          %v1182 = vld [vmem:[%s1181] sm:$0x1f]
          %v1183 = vld [vmem:[%s1181 + $0x8] sm:$0x1f]
          %v1184 = vld [vmem:[%s1181 + $0x10] sm:$0x1f]
          %v1185 = vld [vmem:[%s1181 + $0x18] sm:$0x1f]
          %s1186 = scalar_lea.vmem %s537, 8
          %v1187 = vld [vmem:[%s1186] sm:$0xf]
          %s1188 = sadd.s32 %s824, 1024
          %v1189 = vstv %s1188
          %v1190 = vadd.s32 %v1189, %v826
          %v1191 = vadd.s32 %v1189, %v827
          %v1192 = vadd.s32 %v1189, %v828
          %v1193 = vadd.s32 %v1189, %v829
          %vm1194 = vcmp.lt.s32.totalorder %v1190, 1152
          %vm1195 = vcmp.lt.s32.totalorder %v1191, 1152
          %vm1196 = vcmp.lt.s32.totalorder %v1192, 1152
          %vm1197 = vcmp.lt.s32.totalorder %v1193, 1152
          %vm1198 = vcmp.ge.s32.totalorder %v1187, 0
          %v1199 = vsel %vm1198, 1, 0
          %v1200 = vperm.slane %v1199, 0
          %v1201 = vperm.slane %v1199, 1
          %v1202 = vperm.slane %v1199, 2
          %v1203 = vperm.slane %v1199, 3
          %vm1204 = vcmp.ne.s32.totalorder %v1200, 0
          %vm1205 = vcmp.ne.s32.totalorder %v1201, 0
          %vm1206 = vcmp.ne.s32.totalorder %v1202, 0
          %vm1207 = vcmp.ne.s32.totalorder %v1203, 0
          %vm1208 = vmand %vm1194, %vm1204
          %vm1209 = vmand %vm1195, %vm1205
          %vm1210 = vmand %vm1196, %vm1206
          %vm1211 = vmand %vm1197, %vm1207
          %v1212 = vsel %vm861, %v1182, -inf
          %v1213 = vrot.slane %v1212, 4
          %v1214 = vmax.f32 %v1212, %v1213
          %v1215 = vrot.slane %v1214, 2
          %v1216 = vmax.f32 %v1214, %v1215
          %v1217 = vrot.slane %v1216, 1
          %v1218 = vmax.f32 %v1216, %v1217
          %v1219 = vsel %vm861, %v1183, -inf
          %v1220 = vrot.slane %v1219, 4
          %v1221 = vmax.f32 %v1219, %v1220
          %v1222 = vrot.slane %v1221, 2
          %v1223 = vmax.f32 %v1221, %v1222
          %v1224 = vrot.slane %v1223, 1
          %v1225 = vmax.f32 %v1223, %v1224
          %v1226 = vsel %vm861, %v1184, -inf
          %v1227 = vrot.slane %v1226, 4
          %v1228 = vmax.f32 %v1226, %v1227
          %v1229 = vrot.slane %v1228, 2
          %v1230 = vmax.f32 %v1228, %v1229
          %v1231 = vrot.slane %v1230, 1
          %v1232 = vmax.f32 %v1230, %v1231
          %v1233 = vsel %vm861, %v1185, -inf
          %v1234 = vrot.slane %v1233, 4
          %v1235 = vmax.f32 %v1233, %v1234
          %v1236 = vrot.slane %v1235, 2
          %v1237 = vmax.f32 %v1235, %v1236
          %v1238 = vrot.slane %v1237, 1
          %v1239 = vmax.f32 %v1237, %v1238
          %v1240 = vsub.f32 %v1182, %v1218
          %v1241 = vsub.f32 %v1183, %v1225
          %v1242 = vsub.f32 %v1184, %v1232
          %v1243 = vsub.f32 %v1185, %v1239
          %v1244 = vmul.f32 %v1240, 1.442695
          %v1245 = vpow.pop %v1244
          %v1246 = vmul.f32 %v1241, 1.442695
          %v1247 = vpow.pop %v1246
          %v1248 = vmul.f32 %v1242, 1.442695
          %v1249 = vpow.pop %v1248
          %v1250 = vmul.f32 %v1243, 1.442695
          %v1251 = vpow.pop %v1250
          %v1252 = vsel %vm861, %v1245, 0.0
          %v1253 = vrot.slane %v1252, 4
          %v1254 = vadd.f32 %v1252, %v1253
          %v1255 = vrot.slane %v1254, 2
          %v1256 = vadd.f32 %v1254, %v1255
          %v1257 = vrot.slane %v1256, 1
          %v1258 = vadd.f32 %v1256, %v1257
          %v1259 = vsel %vm861, %v1247, 0.0
          %v1260 = vrot.slane %v1259, 4
          %v1261 = vadd.f32 %v1259, %v1260
          %v1262 = vrot.slane %v1261, 2
          %v1263 = vadd.f32 %v1261, %v1262
          %v1264 = vrot.slane %v1263, 1
          %v1265 = vadd.f32 %v1263, %v1264
          %v1266 = vsel %vm861, %v1249, 0.0
          %v1267 = vrot.slane %v1266, 4
          %v1268 = vadd.f32 %v1266, %v1267
          %v1269 = vrot.slane %v1268, 2
          %v1270 = vadd.f32 %v1268, %v1269
          %v1271 = vrot.slane %v1270, 1
          %v1272 = vadd.f32 %v1270, %v1271
          %v1273 = vsel %vm861, %v1251, 0.0
          %v1274 = vrot.slane %v1273, 4
          %v1275 = vadd.f32 %v1273, %v1274
          %v1276 = vrot.slane %v1275, 2
          %v1277 = vadd.f32 %v1275, %v1276
          %v1278 = vrot.slane %v1277, 1
          %v1279 = vadd.f32 %v1277, %v1278
          %v1280 = vlog2.pop %v1258
          %v1281 = vmul.f32 %v1280, 0.6931472
          %v1282 = vlog2.pop %v1265
          %v1283 = vmul.f32 %v1282, 0.6931472
          %v1284 = vlog2.pop %v1272
          %v1285 = vmul.f32 %v1284, 0.6931472
          %v1286 = vlog2.pop %v1279
          %v1287 = vmul.f32 %v1286, 0.6931472
          %v1288 = vadd.f32 %v1218, %v1281
          %v1289 = vadd.f32 %v1225, %v1283
          %v1290 = vadd.f32 %v1232, %v1285
          %v1291 = vadd.f32 %v1239, %v1287
          %v1292 = vperm.slane %v1187, 0
          %v1293 = vperm.slane %v1187, 1
          %v1294 = vperm.slane %v1187, 2
          %v1295 = vperm.slane %v1187, 3
          %vm1296 = vcmp.eq.s32.totalorder %v831, %v1292
          %vm1297 = vcmp.eq.s32.totalorder %v831, %v1293
          %vm1298 = vcmp.eq.s32.totalorder %v831, %v1294
          %vm1299 = vcmp.eq.s32.totalorder %v831, %v1295
          %v1300 = vsel %vm1296, %v1182, 0.0
          %v1301 = vsel %vm1297, %v1183, 0.0
          %v1302 = vsel %vm1298, %v1184, 0.0
          %v1303 = vsel %vm1299, %v1185, 0.0
          %v1304 = vsel %vm861, %v1300, 0.0
          %v1305 = vrot.slane %v1304, 4
          %v1306 = vadd.f32 %v1304, %v1305
          %v1307 = vrot.slane %v1306, 2
          %v1308 = vadd.f32 %v1306, %v1307
          %v1309 = vrot.slane %v1308, 1
          %v1310 = vadd.f32 %v1308, %v1309
          %v1311 = vsel %vm861, %v1301, 0.0
          %v1312 = vrot.slane %v1311, 4
          %v1313 = vadd.f32 %v1311, %v1312
          %v1314 = vrot.slane %v1313, 2
          %v1315 = vadd.f32 %v1313, %v1314
          %v1316 = vrot.slane %v1315, 1
          %v1317 = vadd.f32 %v1315, %v1316
          %v1318 = vsel %vm861, %v1302, 0.0
          %v1319 = vrot.slane %v1318, 4
          %v1320 = vadd.f32 %v1318, %v1319
          %v1321 = vrot.slane %v1320, 2
          %v1322 = vadd.f32 %v1320, %v1321
          %v1323 = vrot.slane %v1322, 1
          %v1324 = vadd.f32 %v1322, %v1323
          %v1325 = vsel %vm861, %v1303, 0.0
          %v1326 = vrot.slane %v1325, 4
          %v1327 = vadd.f32 %v1325, %v1326
          %v1328 = vrot.slane %v1327, 2
          %v1329 = vadd.f32 %v1327, %v1328
          %v1330 = vrot.slane %v1329, 1
          %v1331 = vadd.f32 %v1329, %v1330
          %v1332 = vsub.f32 %v1288, %v1310
          %v1333 = vsub.f32 %v1289, %v1317
          %v1334 = vsub.f32 %v1290, %v1324
          %v1335 = vsub.f32 %v1291, %v1331
          %v1336 = vsel %vm1208, %v1332, 0.0
          %v1337 = vsel %vm1209, %v1333, 0.0
          %v1338 = vsel %vm1210, %v1334, 0.0
          %v1339 = vsel %vm1211, %v1335, 0.0
          %v1340 = vadd.f32 %v1165, %v1336
          %v1341 = vadd.f32 %v1166, %v1337
          %v1342 = vadd.f32 %v1167, %v1338
          %v1343 = vadd.f32 %v1168, %v1339
          %v1344 = vsel %vm1208, 1, 0
          %v1345 = vsel %vm1209, 1, 0
          %v1346 = vsel %vm1210, 1, 0
          %v1347 = vsel %vm1211, 1, 0
          %v1348 = vcvt.s32.f32 %v1344
          %v1349 = vcvt.s32.f32 %v1345
          %v1350 = vcvt.s32.f32 %v1346
          %v1351 = vcvt.s32.f32 %v1347
          %v1352 = vadd.f32 %v1177, %v1348
          %v1353 = vadd.f32 %v1178, %v1349
          %v1354 = vadd.f32 %v1179, %v1350
          %v1355 = vadd.f32 %v1180, %v1351
          %v1356 = vld [vmem:[#allocation4] sm:$0xf]
          %v1361 = vrot.slane %v1341, 7
          %v1362 = vrot.slane %v1342, 6
          %v1363 = vrot.slane %v1343, 5
          %vm1364 = vcmask 1040384
          %v1365 = vsel %vm1364, %v1340, %v1361
          %vm1366 = vcmask 1042434
          %v1367 = vsel %vm1366, %v1362, %v1363
          %vm1368 = vcmask 1041408
          %v1369 = vsel %vm1368, %v1365, %v1367
          %v1371 = vadd.f32 %v1356, %v1369
          %v1372 = vlaneseq
          %vm1373 = vcmp.ge.s32.totalorder %v1372, 0
          %vm1374 = vcmp.lt.s32.totalorder %v1372, 512
          %vm1375 = vmand %vm1373, %vm1374
          %1376 = vst.msk [vmem:[#allocation4] sm:$0xf] %vm1375, %v1371
          %v1377 = vld [vmem:[#allocation5] sm:$0xf]
          %v1382 = vrot.slane %v1353, 7
          %v1383 = vrot.slane %v1354, 6
          %v1384 = vrot.slane %v1355, 5
          %v1385 = vsel %vm1364, %v1352, %v1382
          %v1386 = vsel %vm1366, %v1383, %v1384
          %v1387 = vsel %vm1368, %v1385, %v1386
          %v1389 = vadd.f32 %v1377, %v1387
          %1390 = vst.msk [vmem:[#allocation5] sm:$0xf] %vm1375, %v1389
        $region56: #{train_loss_discrete.1} parent=43 // pred_fallthru
          _
        %p1391 = scmp.ge.s32.totalorder %s18, 2
        // Predicated region
        $region57: #{train_loss_discrete.1} parent=43 // pred_check
          %p1392 = pneg %p1391
        $region58: #{train_loss_discrete.1} parent=43 // pred_check_branch
          %1394 = sbr.rel (%p1392) target = $region60
        $region59: #{train_loss_discrete.1} parent=43 // pred_region
          %s1395 = ssub.s32 %s18, 2
          %s1396 = smul.u32 %s1395, 512
          %v1397 = vlaneseq
          %v1398 = vand.u32 %v1397, 127
          %v1399 = vadd.s32 %v1398, 128
          %v1400 = vadd.s32 %v1398, 256
          %v1401 = vadd.s32 %v1398, 384
          %v1402 = vlaneseq
          %v1403 = vshrl.u32 %v1402, 7
          %v1404 = vld [vmem:[%s556] sm:$0x77]
          %v1405 = vld [vmem:[%s556 + $0x8] sm:$0x77]
          %v1406 = vld [vmem:[%s574] sm:$0xf]
          %s1407 = sadd.s32 %s1396, 0
          %v1408 = vstv %s1407
          %v1409 = vadd.s32 %v1408, %v1398
          %v1410 = vadd.s32 %v1408, %v1399
          %v1411 = vadd.s32 %v1408, %v1400
          %v1412 = vadd.s32 %v1408, %v1401
          %vm1413 = vcmp.lt.s32.totalorder %v1409, 2
          %vm1414 = vcmp.lt.s32.totalorder %v1410, 2
          %vm1415 = vcmp.lt.s32.totalorder %v1411, 2
          %vm1416 = vcmp.lt.s32.totalorder %v1412, 2
          %1419 = vst [vmem:[#allocation1] ss:$2 sm:$0xff] %v1404
          %s1420 = scalar_lea.vmem [#allocation1], 16
          %1421 = vst [vmem:[%s1420] ss:$2 sm:$0xff] %v1405
          %v1422 = vld.sshfl [vmem:[#allocation1] sm:$0xff pattern:$0x75316420]
          %v1423 = vld.sshfl [vmem:[#allocation1 + $0x8] sm:$0xff pattern:$0x75316420]
          %v1424 = vld.sshfl [vmem:[#allocation1 + $0x10] sm:$0xff pattern:$0x75316420]
          %v1425 = vld.sshfl [vmem:[#allocation1 + $0x18] sm:$0xff pattern:$0x75316420]
          %vm1430 = vcmask 1042432
          %v1431 = vsel %vm1430, %v1422, -inf
          %v1432 = vrot.slane %v1431, 4
          %v1433 = vmax.f32 %v1431, %v1432
          %v1434 = vrot.slane %v1433, 2
          %v1435 = vmax.f32 %v1433, %v1434
          %v1436 = vrot.slane %v1435, 1
          %v1437 = vmax.f32 %v1435, %v1436
          %v1438 = vsel %vm1430, %v1423, -inf
          %v1439 = vrot.slane %v1438, 4
          %v1440 = vmax.f32 %v1438, %v1439
          %v1441 = vrot.slane %v1440, 2
          %v1442 = vmax.f32 %v1440, %v1441
          %v1443 = vrot.slane %v1442, 1
          %v1444 = vmax.f32 %v1442, %v1443
          %v1445 = vsel %vm1430, %v1424, -inf
          %v1446 = vrot.slane %v1445, 4
          %v1447 = vmax.f32 %v1445, %v1446
          %v1448 = vrot.slane %v1447, 2
          %v1449 = vmax.f32 %v1447, %v1448
          %v1450 = vrot.slane %v1449, 1
          %v1451 = vmax.f32 %v1449, %v1450
          %v1452 = vsel %vm1430, %v1425, -inf
          %v1453 = vrot.slane %v1452, 4
          %v1454 = vmax.f32 %v1452, %v1453
          %v1455 = vrot.slane %v1454, 2
          %v1456 = vmax.f32 %v1454, %v1455
          %v1457 = vrot.slane %v1456, 1
          %v1458 = vmax.f32 %v1456, %v1457
          %v1463 = vrot.slane %v1444, 4
          %v1464 = vrot.slane %v1458, 4
          %vm1465 = vcmask 1043456
          %v1466 = vsel %vm1465, %v1437, %v1463
          %v1467 = vsel %vm1465, %v1451, %v1464
          %v1470 = vsub.f32 %v1404, %v1466
          %v1471 = vsub.f32 %v1405, %v1467
          %v1472 = vmul.f32 %v1470, 1.442695
          %v1473 = vpow.pop %v1472
          %v1474 = vmul.f32 %v1471, 1.442695
          %v1475 = vpow.pop %v1474
          %1478 = vst [vmem:[#allocation1] ss:$2 sm:$0xff] %v1473
          %s1479 = scalar_lea.vmem [#allocation1], 16
          %1480 = vst [vmem:[%s1479] ss:$2 sm:$0xff] %v1475
          %v1481 = vld.sshfl [vmem:[#allocation1] sm:$0xff pattern:$0x75316420]
          %v1482 = vld.sshfl [vmem:[#allocation1 + $0x8] sm:$0xff pattern:$0x75316420]
          %v1483 = vld.sshfl [vmem:[#allocation1 + $0x10] sm:$0xff pattern:$0x75316420]
          %v1484 = vld.sshfl [vmem:[#allocation1 + $0x18] sm:$0xff pattern:$0x75316420]
          %v1489 = vsel %vm1430, %v1481, 0.0
          %v1490 = vrot.slane %v1489, 4
          %v1491 = vadd.f32 %v1489, %v1490
          %v1492 = vrot.slane %v1491, 2
          %v1493 = vadd.f32 %v1491, %v1492
          %v1494 = vrot.slane %v1493, 1
          %v1495 = vadd.f32 %v1493, %v1494
          %v1496 = vsel %vm1430, %v1482, 0.0
          %v1497 = vrot.slane %v1496, 4
          %v1498 = vadd.f32 %v1496, %v1497
          %v1499 = vrot.slane %v1498, 2
          %v1500 = vadd.f32 %v1498, %v1499
          %v1501 = vrot.slane %v1500, 1
          %v1502 = vadd.f32 %v1500, %v1501
          %v1503 = vsel %vm1430, %v1483, 0.0
          %v1504 = vrot.slane %v1503, 4
          %v1505 = vadd.f32 %v1503, %v1504
          %v1506 = vrot.slane %v1505, 2
          %v1507 = vadd.f32 %v1505, %v1506
          %v1508 = vrot.slane %v1507, 1
          %v1509 = vadd.f32 %v1507, %v1508
          %v1510 = vsel %vm1430, %v1484, 0.0
          %v1511 = vrot.slane %v1510, 4
          %v1512 = vadd.f32 %v1510, %v1511
          %v1513 = vrot.slane %v1512, 2
          %v1514 = vadd.f32 %v1512, %v1513
          %v1515 = vrot.slane %v1514, 1
          %v1516 = vadd.f32 %v1514, %v1515
          %v1517 = vlog2.pop %v1495
          %v1518 = vmul.f32 %v1517, 0.6931472
          %v1519 = vlog2.pop %v1502
          %v1520 = vmul.f32 %v1519, 0.6931472
          %v1521 = vlog2.pop %v1509
          %v1522 = vmul.f32 %v1521, 0.6931472
          %v1523 = vlog2.pop %v1516
          %v1524 = vmul.f32 %v1523, 0.6931472
          %v1525 = vadd.f32 %v1437, %v1518
          %v1526 = vadd.f32 %v1444, %v1520
          %v1527 = vadd.f32 %v1451, %v1522
          %v1528 = vadd.f32 %v1458, %v1524
          %v1529 = vperm.slane %v1406, 0
          %v1530 = vperm.slane %v1406, 1
          %v1531 = vperm.slane %v1406, 2
          %v1532 = vperm.slane %v1406, 3
          %vm1533 = vcmp.eq.s32.totalorder %v1403, %v1529
          %vm1534 = vcmp.eq.s32.totalorder %v1403, %v1530
          %vm1535 = vcmp.eq.s32.totalorder %v1403, %v1531
          %vm1536 = vcmp.eq.s32.totalorder %v1403, %v1532
          %1537 = vst [vmem:[#allocation1] ss:$2 sm:$0xff] %v1404
          %s1538 = scalar_lea.vmem [#allocation1], 16
          %1539 = vst [vmem:[%s1538] ss:$2 sm:$0xff] %v1405
          %v1540 = vld.sshfl [vmem:[#allocation1] sm:$0xff pattern:$0x75316420]
          %v1541 = vld.sshfl [vmem:[#allocation1 + $0x8] sm:$0xff pattern:$0x75316420]
          %v1542 = vld.sshfl [vmem:[#allocation1 + $0x10] sm:$0xff pattern:$0x75316420]
          %v1543 = vld.sshfl [vmem:[#allocation1 + $0x18] sm:$0xff pattern:$0x75316420]
          %v1548 = vsel %vm1533, %v1540, 0.0
          %v1549 = vsel %vm1534, %v1541, 0.0
          %v1550 = vsel %vm1535, %v1542, 0.0
          %v1551 = vsel %vm1536, %v1543, 0.0
          %v1552 = vsel %vm1430, %v1548, 0.0
          %v1553 = vrot.slane %v1552, 4
          %v1554 = vadd.f32 %v1552, %v1553
          %v1555 = vrot.slane %v1554, 2
          %v1556 = vadd.f32 %v1554, %v1555
          %v1557 = vrot.slane %v1556, 1
          %v1558 = vadd.f32 %v1556, %v1557
          %v1559 = vsel %vm1430, %v1549, 0.0
          %v1560 = vrot.slane %v1559, 4
          %v1561 = vadd.f32 %v1559, %v1560
          %v1562 = vrot.slane %v1561, 2
          %v1563 = vadd.f32 %v1561, %v1562
          %v1564 = vrot.slane %v1563, 1
          %v1565 = vadd.f32 %v1563, %v1564
          %v1566 = vsel %vm1430, %v1550, 0.0
          %v1567 = vrot.slane %v1566, 4
          %v1568 = vadd.f32 %v1566, %v1567
          %v1569 = vrot.slane %v1568, 2
          %v1570 = vadd.f32 %v1568, %v1569
          %v1571 = vrot.slane %v1570, 1
          %v1572 = vadd.f32 %v1570, %v1571
          %v1573 = vsel %vm1430, %v1551, 0.0
          %v1574 = vrot.slane %v1573, 4
          %v1575 = vadd.f32 %v1573, %v1574
          %v1576 = vrot.slane %v1575, 2
          %v1577 = vadd.f32 %v1575, %v1576
          %v1578 = vrot.slane %v1577, 1
          %v1579 = vadd.f32 %v1577, %v1578
          %v1580 = vsub.f32 %v1525, %v1558
          %v1581 = vsub.f32 %v1526, %v1565
          %v1582 = vsub.f32 %v1527, %v1572
          %v1583 = vsub.f32 %v1528, %v1579
          %v1584 = vsel %vm1413, %v1580, 0.0
          %v1585 = vsel %vm1414, %v1581, 0.0
          %v1586 = vsel %vm1415, %v1582, 0.0
          %v1587 = vsel %vm1416, %v1583, 0.0
          %v1588 = vadd.f32 %v1584, 0.0
          %v1589 = vadd.f32 %v1585, 0.0
          %v1590 = vadd.f32 %v1586, 0.0
          %v1591 = vadd.f32 %v1587, 0.0
          %v1592 = vsel %vm1413, 1, 0
          %v1593 = vsel %vm1414, 1, 0
          %v1594 = vsel %vm1415, 1, 0
          %v1595 = vsel %vm1416, 1, 0
          %v1596 = vcvt.s32.f32 %v1592
          %v1597 = vcvt.s32.f32 %v1593
          %v1598 = vcvt.s32.f32 %v1594
          %v1599 = vcvt.s32.f32 %v1595
          %v1600 = vadd.f32 %v1596, 0.0
          %v1601 = vadd.f32 %v1597, 0.0
          %v1602 = vadd.f32 %v1598, 0.0
          %v1603 = vadd.f32 %v1599, 0.0
          %v1604 = vld [vmem:[#allocation6] sm:$0xf]
          %v1609 = vrot.slane %v1589, 7
          %v1610 = vrot.slane %v1590, 6
          %v1611 = vrot.slane %v1591, 5
          %vm1612 = vcmask 1040384
          %v1613 = vsel %vm1612, %v1588, %v1609
          %vm1614 = vcmask 1042434
          %v1615 = vsel %vm1614, %v1610, %v1611
          %vm1616 = vcmask 1041408
          %v1617 = vsel %vm1616, %v1613, %v1615
          %v1619 = vadd.f32 %v1604, %v1617
          %v1620 = vlaneseq
          %vm1621 = vcmp.ge.s32.totalorder %v1620, 0
          %vm1622 = vcmp.lt.s32.totalorder %v1620, 512
          %vm1623 = vmand %vm1621, %vm1622
          %1624 = vst.msk [vmem:[#allocation6] sm:$0xf] %vm1623, %v1619
          %v1625 = vld [vmem:[#allocation7] sm:$0xf]
          %v1630 = vrot.slane %v1601, 7
          %v1631 = vrot.slane %v1602, 6
          %v1632 = vrot.slane %v1603, 5
          %v1633 = vsel %vm1612, %v1600, %v1630
          %v1634 = vsel %vm1614, %v1631, %v1632
          %v1635 = vsel %vm1616, %v1633, %v1634
          %v1637 = vadd.f32 %v1625, %v1635
          %1638 = vst.msk [vmem:[#allocation7] sm:$0xf] %vm1623, %v1637
        $region60: #{train_loss_discrete.1} parent=43 // pred_fallthru
          _
        %p1639 = scmp.eq.s32.totalorder %s18, 2
        // Predicated region
        $region61: #{train_loss_discrete.1} parent=43 // pred_check
          %p1640 = pneg %p1639
        $region62: #{train_loss_discrete.1} parent=43 // pred_check_branch
          %1642 = sbr.rel (%p1640) target = $region64
        $region63: #{train_loss_discrete.1} parent=43 // pred_region
          %v1643 = vld [vmem:[#allocation2] sm:$0xf]
          %v1645 = vperm.slane %v1643, 0
          %v1646 = vperm.slane %v1643, 1
          %v1647 = vperm.slane %v1643, 2
          %v1648 = vperm.slane %v1643, 3
          %vm1653 = vcmask 1040384
          %v1654 = vsel %vm1653, %v1645, 0.0
          %v1655 = vsel %vm1653, %v1646, 0.0
          %v1656 = vadd.f32 %v1654, %v1655
          %v1657 = vsel %vm1653, %v1647, 0.0
          %v1658 = vadd.f32 %v1656, %v1657
          %v1659 = vsel %vm1653, %v1648, 0.0
          %v1660 = vadd.f32 %v1658, %v1659
          %1661 = vadd.xlane.f32.xlu0 %v1660
          %v1662 = vpop.xlane.xlu0 %1661
          %v1663 = vld [vmem:[#allocation4] sm:$0xf]
          %v1665 = vperm.slane %v1663, 0
          %v1666 = vperm.slane %v1663, 1
          %v1667 = vperm.slane %v1663, 2
          %v1668 = vperm.slane %v1663, 3
          %v1673 = vsel %vm1653, %v1665, 0.0
          %v1674 = vsel %vm1653, %v1666, 0.0
          %v1675 = vadd.f32 %v1673, %v1674
          %v1676 = vsel %vm1653, %v1667, 0.0
          %v1677 = vadd.f32 %v1675, %v1676
          %v1678 = vsel %vm1653, %v1668, 0.0
          %v1679 = vadd.f32 %v1677, %v1678
          %1680 = vadd.xlane.f32.xlu0 %v1679
          %v1681 = vpop.xlane.xlu0 %1680
          %v1682 = vld [vmem:[#allocation6] sm:$0xf]
          %v1684 = vperm.slane %v1682, 0
          %v1685 = vperm.slane %v1682, 1
          %v1686 = vperm.slane %v1682, 2
          %v1687 = vperm.slane %v1682, 3
          %v1692 = vsel %vm1653, %v1684, 0.0
          %v1693 = vsel %vm1653, %v1685, 0.0
          %v1694 = vadd.f32 %v1692, %v1693
          %v1695 = vsel %vm1653, %v1686, 0.0
          %v1696 = vadd.f32 %v1694, %v1695
          %v1697 = vsel %vm1653, %v1687, 0.0
          %v1698 = vadd.f32 %v1696, %v1697
          %1699 = vadd.xlane.f32.xlu0 %v1698
          %v1700 = vpop.xlane.xlu0 %1699
          %v1701 = vld [vmem:[#allocation3] sm:$0xf]
          %v1703 = vperm.slane %v1701, 0
          %v1704 = vperm.slane %v1701, 1
          %v1705 = vperm.slane %v1701, 2
          %v1706 = vperm.slane %v1701, 3
          %v1711 = vsel %vm1653, %v1703, 0.0
          %v1712 = vsel %vm1653, %v1704, 0.0
          %v1713 = vadd.f32 %v1711, %v1712
          %v1714 = vsel %vm1653, %v1705, 0.0
          %v1715 = vadd.f32 %v1713, %v1714
          %v1716 = vsel %vm1653, %v1706, 0.0
          %v1717 = vadd.f32 %v1715, %v1716
          %1718 = vadd.xlane.f32.xlu0 %v1717
          %v1719 = vpop.xlane.xlu0 %1718
          %v1720 = vmax.f32 %v1719, 1.0
          %v1721 = vld [vmem:[#allocation5] sm:$0xf]
          %v1723 = vperm.slane %v1721, 0
          %v1724 = vperm.slane %v1721, 1
          %v1725 = vperm.slane %v1721, 2
          %v1726 = vperm.slane %v1721, 3
          %v1731 = vsel %vm1653, %v1723, 0.0
          %v1732 = vsel %vm1653, %v1724, 0.0
          %v1733 = vadd.f32 %v1731, %v1732
          %v1734 = vsel %vm1653, %v1725, 0.0
          %v1735 = vadd.f32 %v1733, %v1734
          %v1736 = vsel %vm1653, %v1726, 0.0
          %v1737 = vadd.f32 %v1735, %v1736
          %1738 = vadd.xlane.f32.xlu0 %v1737
          %v1739 = vpop.xlane.xlu0 %1738
          %v1740 = vmax.f32 %v1739, 1.0
          %v1741 = vld [vmem:[#allocation7] sm:$0xf]
          %v1743 = vperm.slane %v1741, 0
          %v1744 = vperm.slane %v1741, 1
          %v1745 = vperm.slane %v1741, 2
          %v1746 = vperm.slane %v1741, 3
          %v1751 = vsel %vm1653, %v1743, 0.0
          %v1752 = vsel %vm1653, %v1744, 0.0
          %v1753 = vadd.f32 %v1751, %v1752
          %v1754 = vsel %vm1653, %v1745, 0.0
          %v1755 = vadd.f32 %v1753, %v1754
          %v1756 = vsel %vm1653, %v1746, 0.0
          %v1757 = vadd.f32 %v1755, %v1756
          %1758 = vadd.xlane.f32.xlu0 %v1757
          %v1759 = vpop.xlane.xlu0 %1758
          %v1760 = vmax.f32 %v1759, 1.0
          %v1761 = vrcp.pop %v1720
          %v1762 = vmul.f32 %v1720, %v1761
          %v1763 = vsub.f32 1.0, %v1762
          %v1764 = vmul.f32 %v1761, %v1763
          %v1765 = vadd.f32 %v1761, %v1764
          %vm1766 = vweird.f32 %v1720
          %vm1767 = vweird.f32 %v1761
          %vm1768 = vmor %vm1766, %vm1767
          %v1769 = vsel %vm1768, %v1761, %v1765
          %v1770 = vand.u32 2147483647, %v1720
          %vm1771 = vcmp.eq.f32.partialorder %v1770, 8.507059e+37
          %v1772 = vand.u32 %v1720, 2147483648
          %v1773 = vor.u32 1.1754944e-38, %v1772
          %v1774 = vsel %vm1771, %v1773, %v1769
          %v1775 = vmul.f32 %v1662, %v1774
          %v1776 = vrcp.pop %v1740
          %v1777 = vmul.f32 %v1740, %v1776
          %v1778 = vsub.f32 1.0, %v1777
          %v1779 = vmul.f32 %v1776, %v1778
          %v1780 = vadd.f32 %v1776, %v1779
          %vm1781 = vweird.f32 %v1740
          %vm1782 = vweird.f32 %v1776
          %vm1783 = vmor %vm1781, %vm1782
          %v1784 = vsel %vm1783, %v1776, %v1780
          %v1785 = vand.u32 2147483647, %v1740
          %vm1786 = vcmp.eq.f32.partialorder %v1785, 8.507059e+37
          %v1787 = vand.u32 %v1740, 2147483648
          %v1788 = vor.u32 1.1754944e-38, %v1787
          %v1789 = vsel %vm1786, %v1788, %v1784
          %v1790 = vmul.f32 %v1681, %v1789
          %v1791 = vmul.f32 %v1790, 5.0
          %v1792 = vadd.f32 %v1775, %v1791
          %v1793 = vrcp.pop %v1760
          %v1794 = vmul.f32 %v1760, %v1793
          %v1795 = vsub.f32 1.0, %v1794
          %v1796 = vmul.f32 %v1793, %v1795
          %v1797 = vadd.f32 %v1793, %v1796
          %vm1798 = vweird.f32 %v1760
          %vm1799 = vweird.f32 %v1793
          %vm1800 = vmor %vm1798, %vm1799
          %v1801 = vsel %vm1800, %v1793, %v1797
          %v1802 = vand.u32 2147483647, %v1760
          %vm1803 = vcmp.eq.f32.partialorder %v1802, 8.507059e+37
          %v1804 = vand.u32 %v1760, 2147483648
          %v1805 = vor.u32 1.1754944e-38, %v1804
          %v1806 = vsel %vm1803, %v1805, %v1801
          %v1807 = vmul.f32 %v1700, %v1806
          %v1808 = vadd.f32 %v1792, %v1807
          %vm1809 = vcmask 0
          %1810 = vst.msk [vmem:[#allocation8] sm:$0x1] %vm1809, %v1808
        $region64: #{train_loss_discrete.1} parent=43 // pred_fallthru
          _
        // Predicated region
        $region65: #{train_loss_discrete.1} parent=43 // pred_check
          %p1811 = pneg %p243
        $region66: #{train_loss_discrete.1} parent=43 // pred_check_branch
          %1813 = sbr.rel (%p1811) target = $region68
        $region67: #{train_loss_discrete.1} parent=43 // pred_region
          %1815 = vsyncadd [#allocation9], 0
          %s1817 = sshll.u32 [#allocation8], 4
          %s1818 = int_to_ptr.vmem [resolvable:$true] %s1817
          %s1819 = sshll.u32 %s6, 4
          %s1820 = int_to_ptr.hbm [resolvable:$true] %s1819
          %1822 = dma.vmem_to_hbm [thread:$0]  %s1818, 16, %s1820, [#allocation9]
        $region68: #{train_loss_discrete.1} parent=43 // pred_fallthru
          _
        // Predicated region
        $region69: #{train_loss_discrete.1} parent=43 // pred_check
          %p1823 = pneg %p243
        $region70: #{train_loss_discrete.1} parent=43 // pred_check_branch
          %1825 = sbr.rel (%p1823) target = $region72
        $region71: #{train_loss_discrete.1} parent=43 // pred_region
          %1827 = dma.done [#allocation9], 16
        $region72: #{train_loss_discrete.1} parent=43 // pred_fallthru
          _
      $region44: #{train_loss_discrete.1} parent=5 // pred_fallthru
        _
      %p1828 = scmp.le.s32.totalorder 2, %s13
      // Predicated region
      $region73: #{train_loss_discrete.1} parent=5 // pred_check
        %p1829 = pneg %p1828
      $region74: #{train_loss_discrete.1} parent=5 // pred_check_branch
        %1831 = sbr.rel (%p1829) target = $region76
      $region75: #{train_loss_discrete.1} parent=5 // pred_region
        %s1832 = ssub.s32 %s13, 2
      $region76: #{train_loss_discrete.1} parent=5 // pred_fallthru
        _
    $region6: #{train_loss_discrete.1} parent=1 // loop_footer
      %s17 = sadd.s32 1, %s13
    $region7: #{train_loss_discrete.1} parent=1 // loop_footer_branch
      %12 = sbr.rel target = $region3
    $region8: #{train_loss_discrete.1} parent=1 // loop_exit
      _
    %1833 = vsyncpa [#allocation9], 1
    %s1834 = scalar_lea.sflag [#allocation9], 1
    %1835 = vsyncpa %s1834, 1

</llo_original>
